<compile_context>
chip_gen: v6e
topology: v6e:2x2x1
jax: 0.10.0
libtpu: 0.0.40
codegen_flags: <defaults>
</compile_context>

<pallas_src>
import functools

import numpy as np

import jax
import jax.numpy as jnp
from jax.experimental import pallas as pl
from jax.experimental.pallas import tpu as pltpu


_TARGET_BLOCK_BYTES = 1 << 20   # ~1 MiB of resnet activations per grid step
_MAX_SAMPLES_PER_STEP = 16      # bounds in-kernel unroll & VMEM per step


# ---------------------------------------------------------------------------
# Pallas kernel: fused 1x1-conv chain, channels-first, TB samples per step.
# ---------------------------------------------------------------------------
def _encoder_kernel(x_ref, gb_ref, w1_ref, b1_ref, w2_ref, b2_ref,
                    wc1r_ref, wc2_ref, bc2_ref, o_ref, *, tb, cdtype):
    """x_ref[s]: (C, H*W) channels-first pixels of one sample."""
    f32 = jnp.float32
    w1 = w1_ref[...]      # (RH0, C)
    b1 = b1_ref[...]      # (RH0, 1)
    w2 = w2_ref[...]      # (RH1, RH0)
    b2 = b2_ref[...]      # (RH1, 1)
    wc1r = wc1r_ref[...]  # (CH0, RH1)  combiner conv1, resnet half of concat
    wc2 = wc2_ref[...]    # (CH1, CH0)
    bc2 = bc2_ref[...]    # (CH1, 1)

    for s in range(tb):   # tb is small and static -> unrolled straight-line
        x = x_ref[s]      # (C, HW)
        gb = gb_ref[s]    # (CH0, 1) per-sample goal term + combiner bias 1

        # resnet_compressor (two 1x1 convs)
        h = jnp.dot(w1, x, preferred_element_type=f32) + b1
        h = jnp.maximum(h, 0.0).astype(cdtype)
        h = jnp.dot(w2, h, preferred_element_type=f32) + b2
        h = jnp.maximum(h, 0.0).astype(cdtype)

        # target_obs_combiner on concat([h, goal_emb]) with the concat folded
        # into the split weight + precomputed per-sample goal column gb.
        h = jnp.dot(wc1r, h, preferred_element_type=f32) + gb
        h = jnp.maximum(h, 0.0).astype(cdtype)
        out = jnp.dot(wc2, h, preferred_element_type=f32) + bc2

        o_ref[s] = out.astype(o_ref.dtype)   # (CH1, HW) = PyTorch flatten order


def _run_encoder_kernel(x3, gb3, kp, *, tb, cdtype):
    b_pad, c, hw = x3.shape
    ch0 = gb3.shape[1]
    ch1 = kp["bc2_col"].shape[0]
    assert b_pad % tb == 0

    operands = (x3, gb3, kp["w1"], kp["b1_col"], kp["w2"], kp["b2_col"],
                kp["wc1r"], kp["wc2"], kp["bc2_col"])

    def full_spec(a):
        nd = a.ndim
        return pl.BlockSpec(a.shape, lambda i, _nd=nd: (0,) * _nd)

    in_specs = [
        pl.BlockSpec((tb, c, hw), lambda i: (i, 0, 0)),    # resnet slab
        pl.BlockSpec((tb, ch0, 1), lambda i: (i, 0, 0)),   # goal columns
    ] + [full_spec(a) for a in operands[2:]]

    kernel = functools.partial(_encoder_kernel, tb=tb, cdtype=cdtype)

    return pl.pallas_call(
        kernel,
        out_shape=jax.ShapeDtypeStruct((b_pad, ch1, hw), jnp.float32),
        grid=(b_pad // tb,),
        in_specs=in_specs,
        out_specs=pl.BlockSpec((tb, ch1, hw), lambda i: (i, 0, 0)),
        compiler_params=pltpu.CompilerParams(
            dimension_semantics=("parallel",)),
    )(*operands)


# ---------------------------------------------------------------------------
# Module wrapper (layout glue + tiny per-sample goal precompute).
# ---------------------------------------------------------------------------
class ResnetTensorGoalEncoderPallas:
    """Pallas port of the non-blind / Box-goal ResnetTensorGoalEncoder path."""
    # TODO(synk): the blind, Discrete-goal (nn.Embedding) and 6-D agent-input
    # branches of the PyTorch module are not implemented here.

    def __init__(self, resnet_tensor_shape, goal_dim, goal_embed_dims=32,
                 resnet_compressor_hidden_out_dims=(128, 32),
                 combiner_hidden_out_dims=(128, 32),
                 compute_dtype=jnp.float32, key=None):
        if key is None:
            key = jax.random.PRNGKey(0)
        self.resnet_tensor_shape = tuple(resnet_tensor_shape)
        self.goal_embed_dims = goal_embed_dims
        self.resnet_hid = tuple(resnet_compressor_hidden_out_dims)
        self.comb_hid = tuple(combiner_hidden_out_dims)
        self.compute_dtype = np.dtype(compute_dtype)

        c, h, w = self.resnet_tensor_shape
        rh0, rh1 = self.resnet_hid
        ch0, ch1 = self.comb_hid

        def init(k, shape, scale=0.05):
            return (scale * jax.random.normal(k, shape)).astype(jnp.float32)

        ks = jax.random.split(key, 10)
        # PyTorch-layout parameters: conv/linear weights are (out, in).
        self.params = {
            "w1": init(ks[0], (rh0, c)), "b1": init(ks[1], (rh0,)),
            "w2": init(ks[2], (rh1, rh0)), "b2": init(ks[3], (rh1,)),
            "wg": init(ks[4], (goal_embed_dims, goal_dim)),
            "bg": init(ks[5], (goal_embed_dims,)),
            "wc1": init(ks[6], (ch0, rh1 + goal_embed_dims)),
            "bc1": init(ks[7], (ch0,)),
            "wc2": init(ks[8], (ch1, ch0)), "bc2": init(ks[9], (ch1,)),
        }
        p = self.params
        cd = self.compute_dtype
        # Kernel-side parameters: MXU inputs in compute_dtype, f32 epilogue
        # biases as (d, 1) columns (lane-broadcast in the channels-first
        # layout), combiner conv1 split on the concat boundary.
        self._kparams = {
            "w1": p["w1"].astype(cd), "b1_col": p["b1"][:, None],
            "w2": p["w2"].astype(cd), "b2_col": p["b2"][:, None],
            "wc1r": p["wc1"][:, :rh1].astype(cd),
            "wc1g": p["wc1"][:, rh1:],          # f32, wrapper precompute only
            "bc1": p["bc1"],
            "wg": p["wg"], "bg": p["bg"],
            "wc2": p["wc2"].astype(cd), "bc2_col": p["bc2"][:, None],
        }

    @property
    def output_dims(self):
        _, h, w = self.resnet_tensor_shape
        return self.comb_hid[-1] * h * w

    @functools.partial(jax.jit, static_argnums=0)
    def forward(self, resnet, goal):
        """resnet: (nstep, nsampler, C, H, W); goal: (nstep, nsampler, Dg)."""
        nstep, nsampler = resnet.shape[:2]
        c, h, w = self.resnet_tensor_shape
        hw = h * w
        b = nstep * nsampler
        kp = self._kparams

        # adapt_input -- keep NCHW, only merge the spatial dims (free reshape).
        x3 = resnet.reshape(b, c, hw)
        if x3.dtype != self.compute_dtype:
            x3 = x3.astype(self.compute_dtype)
        goal2 = goal.reshape(b, -1).astype(jnp.float32)

        # Per-sample goal contribution to the first combiner conv, folded with
        # its bias: gb[b] = (goal[b] @ Wg^T + bg) @ Wc1_goal^T + bc1.
        ge = goal2 @ kp["wg"].T + kp["bg"]          # (B, goal_embed)
        gb = ge @ kp["wc1g"].T + kp["bc1"]          # (B, CH0)
        gb3 = gb[:, :, None]                        # (B, CH0, 1) column form

        # Samples per grid step: ~1 MiB of resnet input per step, >= 2 grid
        # steps (v7x megacore), bounded in-kernel unroll.
        per_sample_bytes = c * hw * self.compute_dtype.itemsize
        tb = max(1, min(b, _TARGET_BLOCK_BYTES // max(per_sample_bytes, 1)))
        tb = min(tb, _MAX_SAMPLES_PER_STEP)
        if b >= 2:
            tb = min(tb, max(1, b // 2))
        b_pad = ((b + tb - 1) // tb) * tb
        if b_pad != b:
            x3 = jnp.pad(x3, ((0, b_pad - b), (0, 0), (0, 0)))
            gb3 = jnp.pad(gb3, ((0, b_pad - b), (0, 0), (0, 0)))

        out = _run_encoder_kernel(x3, gb3, kp, tb=tb,
                                  cdtype=self.compute_dtype)  # (b_pad, CH1, HW)

        # (CH1, HW) per sample is already the (c, h, w) flatten order of the
        # PyTorch x.reshape(x.size(0), -1); adapt_output:
        return out[:b].reshape(nstep, nsampler, -1)


# ---------------------------------------------------------------------------
# Pure-JAX reference (mirrors the PyTorch forward, with the explicit concat).
# ---------------------------------------------------------------------------
def _reference_forward(enc, resnet, goal):
    p = enc.params
    nstep, nsampler = resnet.shape[:2]
    c, h, w = enc.resnet_tensor_shape
    hw = h * w
    b = nstep * nsampler
    r = resnet.reshape(b, c, hw).astype(jnp.float32)
    g = goal.reshape(b, -1).astype(jnp.float32)

    x = jnp.einsum("oc,bcp->bop", p["w1"], r) + p["b1"][None, :, None]
    x = jnp.maximum(x, 0.0)
    x = jnp.einsum("oc,bcp->bop", p["w2"], x) + p["b2"][None, :, None]
    x = jnp.maximum(x, 0.0)

    ge = g @ p["wg"].T + p["bg"]
    ge = jnp.broadcast_to(ge[:, :, None], (b, enc.goal_embed_dims, hw))
    cat = jnp.concatenate([x, ge], axis=1)

    y = jnp.einsum("oc,bcp->bop", p["wc1"], cat) + p["bc1"][None, :, None]
    y = jnp.maximum(y, 0.0)
    y = jnp.einsum("oc,bcp->bop", p["wc2"], y) + p["bc2"][None, :, None]
    return y.reshape(nstep, nsampler, -1)


if __name__ == "__main__":
    key = jax.random.PRNGKey(0)
    k_res, k_goal, k_param = jax.random.split(key, 3)

    # Small shapes consistent with the module's forward.
    nstep, nsampler = 2, 2
    c_resnet, h, w = 16, 8, 8
    goal_dim = 8

    enc = ResnetTensorGoalEncoderPallas(
        resnet_tensor_shape=(c_resnet, h, w),
        goal_dim=goal_dim,
        goal_embed_dims=32,
        resnet_compressor_hidden_out_dims=(128, 32),
        combiner_hidden_out_dims=(128, 32),
        key=k_param,
    )

    resnet_obs = jax.random.normal(
        k_res, (nstep, nsampler, c_resnet, h, w), jnp.float32)
    goal_obs = jax.random.normal(k_goal, (nstep, nsampler, goal_dim), jnp.float32)

    out = jax.block_until_ready(enc.forward(resnet_obs, goal_obs))
    assert out.shape == (nstep, nsampler, enc.output_dims), out.shape

    ref = _reference_forward(enc, resnet_obs, goal_obs)
    err = float(jnp.max(jnp.abs(out - ref)))
    assert jnp.allclose(out, ref, atol=1e-3, rtol=1e-3), err

    # bf16 MXU-input variant (v6e/v7x oriented path): same params, input
    # pre-cast by the caller so the kernel streams half the activation bytes;
    # accumulation and epilogue stay f32.
    enc_bf16 = ResnetTensorGoalEncoderPallas(
        resnet_tensor_shape=(c_resnet, h, w),
        goal_dim=goal_dim,
        goal_embed_dims=32,
        resnet_compressor_hidden_out_dims=(128, 32),
        combiner_hidden_out_dims=(128, 32),
        compute_dtype=jnp.bfloat16,
        key=k_param,
    )
    out_bf16 = jax.block_until_ready(
        enc_bf16.forward(resnet_obs.astype(jnp.bfloat16), goal_obs))
    err_bf16 = float(jnp.max(jnp.abs(out_bf16 - ref)))
    assert jnp.allclose(out_bf16, ref, atol=5e-2, rtol=5e-2), err_bf16

    print("KERNEL_OK")
</pallas_src>

<mosaic_0001>
module attributes {stable_mosaic.version = 11 : i64} {
  func.func @_encoder_kernel(%arg0: i32, %arg1: memref<2x16x64xf32, #tpu.memory_space<vmem>>, %arg2: memref<2x128x1xf32, #tpu.memory_space<vmem>>, %arg3: memref<128x16xf32, #tpu.memory_space<vmem>>, %arg4: memref<128x1xf32, #tpu.memory_space<vmem>>, %arg5: memref<32x128xf32, #tpu.memory_space<vmem>>, %arg6: memref<32x1xf32, #tpu.memory_space<vmem>>, %arg7: memref<128x32xf32, #tpu.memory_space<vmem>>, %arg8: memref<32x128xf32, #tpu.memory_space<vmem>>, %arg9: memref<32x1xf32, #tpu.memory_space<vmem>>, %arg10: memref<2x32x64xf32, #tpu.memory_space<vmem>>) attributes {dimension_semantics = [#tpu.dimension_semantics<parallel>], iteration_bounds = array<i64: 2>, scalar_prefetch = 0 : i64, scratch_operands = 0 : i64, tpu.core_type = #tpu.core_type<tc>, window_params = [{transform_indices = @transform_0, window_bounds = array<i64: 2, 16, 64>}, {transform_indices = @transform_1, window_bounds = array<i64: 2, 128, 1>}, {pipeline_mode = #tpu.pipeline_mode<synchronous>, transform_indices = @transform_2, window_bounds = array<i64: 128, 16>}, {pipeline_mode = #tpu.pipeline_mode<synchronous>, transform_indices = @transform_3, window_bounds = array<i64: 128, 1>}, {pipeline_mode = #tpu.pipeline_mode<synchronous>, transform_indices = @transform_4, window_bounds = array<i64: 32, 128>}, {pipeline_mode = #tpu.pipeline_mode<synchronous>, transform_indices = @transform_5, window_bounds = array<i64: 32, 1>}, {pipeline_mode = #tpu.pipeline_mode<synchronous>, transform_indices = @transform_6, window_bounds = array<i64: 128, 32>}, {pipeline_mode = #tpu.pipeline_mode<synchronous>, transform_indices = @transform_7, window_bounds = array<i64: 32, 128>}, {pipeline_mode = #tpu.pipeline_mode<synchronous>, transform_indices = @transform_8, window_bounds = array<i64: 32, 1>}, {transform_indices = @transform_9, window_bounds = array<i64: 2, 32, 64>}]} {
    %c0 = arith.constant 0 : index
    %c0_0 = arith.constant 0 : index
    %0 = vector.load %arg3[%c0, %c0_0] : memref<128x16xf32, #tpu.memory_space<vmem>>, vector<128x16xf32>
    %c0_1 = arith.constant 0 : index
    %c0_2 = arith.constant 0 : index
    %1 = vector.load %arg4[%c0_1, %c0_2] : memref<128x1xf32, #tpu.memory_space<vmem>>, vector<128x1xf32>
    %c0_3 = arith.constant 0 : index
    %c0_4 = arith.constant 0 : index
    %2 = vector.load %arg5[%c0_3, %c0_4] : memref<32x128xf32, #tpu.memory_space<vmem>>, vector<32x128xf32>
    %c0_5 = arith.constant 0 : index
    %c0_6 = arith.constant 0 : index
    %3 = vector.load %arg6[%c0_5, %c0_6] : memref<32x1xf32, #tpu.memory_space<vmem>>, vector<32x1xf32>
    %c0_7 = arith.constant 0 : index
    %c0_8 = arith.constant 0 : index
    %4 = vector.load %arg7[%c0_7, %c0_8] : memref<128x32xf32, #tpu.memory_space<vmem>>, vector<128x32xf32>
    %c0_9 = arith.constant 0 : index
    %c0_10 = arith.constant 0 : index
    %5 = vector.load %arg8[%c0_9, %c0_10] : memref<32x128xf32, #tpu.memory_space<vmem>>, vector<32x128xf32>
    %c0_11 = arith.constant 0 : index
    %c0_12 = arith.constant 0 : index
    %6 = vector.load %arg9[%c0_11, %c0_12] : memref<32x1xf32, #tpu.memory_space<vmem>>, vector<32x1xf32>
    %c0_13 = arith.constant 0 : index
    %c0_14 = arith.constant 0 : index
    %c0_15 = arith.constant 0 : index
    %7 = vector.load %arg1[%c0_13, %c0_14, %c0_15] : memref<2x16x64xf32, #tpu.memory_space<vmem>>, vector<1x16x64xf32>
    %8 = vector.shape_cast %7 : vector<1x16x64xf32> to vector<16x64xf32>
    %c0_16 = arith.constant 0 : index
    %c0_17 = arith.constant 0 : index
    %c0_18 = arith.constant 0 : index
    %9 = vector.load %arg2[%c0_16, %c0_17, %c0_18] : memref<2x128x1xf32, #tpu.memory_space<vmem>>, vector<1x128x1xf32>
    %10 = vector.shape_cast %9 : vector<1x128x1xf32> to vector<128x1xf32>
    %cst = arith.constant dense<0.000000e+00> : vector<128x64xf32>
    %11 = tpu.matmul %0, %8, %cst {dimension_numbers = #tpu.dot_dimension_numbers<[1], [0], [0], [1], [0, 0, 1, 1], [], []>} : vector<128x16xf32>, vector<16x64xf32>, vector<128x64xf32> -> vector<128x64xf32>
    %12 = vector.broadcast %1 : vector<128x1xf32> to vector<128x64xf32>
    %13 = arith.addf %11, %12 : vector<128x64xf32>
    %cst_19 = arith.constant 0.000000e+00 : f32
    %14 = vector.broadcast %cst_19 : f32 to vector<128x64xf32>
    %15 = arith.maximumf %13, %14 : vector<128x64xf32>
    %cst_20 = arith.constant dense<0.000000e+00> : vector<32x64xf32>
    %16 = tpu.matmul %2, %15, %cst_20 {dimension_numbers = #tpu.dot_dimension_numbers<[1], [0], [0], [1], [0, 0, 1, 1], [], []>} : vector<32x128xf32>, vector<128x64xf32>, vector<32x64xf32> -> vector<32x64xf32>
    %17 = vector.broadcast %3 : vector<32x1xf32> to vector<32x64xf32>
    %18 = arith.addf %16, %17 : vector<32x64xf32>
    %cst_21 = arith.constant 0.000000e+00 : f32
    %19 = vector.broadcast %cst_21 : f32 to vector<32x64xf32>
    %20 = arith.maximumf %18, %19 : vector<32x64xf32>
    %cst_22 = arith.constant dense<0.000000e+00> : vector<128x64xf32>
    %21 = tpu.matmul %4, %20, %cst_22 {dimension_numbers = #tpu.dot_dimension_numbers<[1], [0], [0], [1], [0, 0, 1, 1], [], []>} : vector<128x32xf32>, vector<32x64xf32>, vector<128x64xf32> -> vector<128x64xf32>
    %22 = vector.broadcast %10 : vector<128x1xf32> to vector<128x64xf32>
    %23 = arith.addf %21, %22 : vector<128x64xf32>
    %cst_23 = arith.constant 0.000000e+00 : f32
    %24 = vector.broadcast %cst_23 : f32 to vector<128x64xf32>
    %25 = arith.maximumf %23, %24 : vector<128x64xf32>
    %cst_24 = arith.constant dense<0.000000e+00> : vector<32x64xf32>
    %26 = tpu.matmul %5, %25, %cst_24 {dimension_numbers = #tpu.dot_dimension_numbers<[1], [0], [0], [1], [0, 0, 1, 1], [], []>} : vector<32x128xf32>, vector<128x64xf32>, vector<32x64xf32> -> vector<32x64xf32>
    %27 = vector.broadcast %6 : vector<32x1xf32> to vector<32x64xf32>
    %28 = arith.addf %26, %27 : vector<32x64xf32>
    %c0_25 = arith.constant 0 : index
    %c0_26 = arith.constant 0 : index
    %c0_27 = arith.constant 0 : index
    %29 = vector.load %arg10[%c0_25, %c0_26, %c0_27] : memref<2x32x64xf32, #tpu.memory_space<vmem>>, vector<1x32x64xf32>
    %30 = vector.shape_cast %29 : vector<1x32x64xf32> to vector<32x64xf32>
    %31 = vector.shape_cast %28 : vector<32x64xf32> to vector<1x32x64xf32>
    tpu.vector_store %arg10[%c0_25, %c0_26, %c0_27], %31 {strides = array<i32>} : memref<2x32x64xf32, #tpu.memory_space<vmem>>, vector<1x32x64xf32>,
    %c1 = arith.constant 1 : index
    %c0_28 = arith.constant 0 : index
    %c0_29 = arith.constant 0 : index
    %32 = vector.load %arg1[%c1, %c0_28, %c0_29] : memref<2x16x64xf32, #tpu.memory_space<vmem>>, vector<1x16x64xf32>
    %33 = vector.shape_cast %32 : vector<1x16x64xf32> to vector<16x64xf32>
    %c1_30 = arith.constant 1 : index
    %c0_31 = arith.constant 0 : index
    %c0_32 = arith.constant 0 : index
    %34 = vector.load %arg2[%c1_30, %c0_31, %c0_32] : memref<2x128x1xf32, #tpu.memory_space<vmem>>, vector<1x128x1xf32>
    %35 = vector.shape_cast %34 : vector<1x128x1xf32> to vector<128x1xf32>
    %cst_33 = arith.constant dense<0.000000e+00> : vector<128x64xf32>
    %36 = tpu.matmul %0, %33, %cst_33 {dimension_numbers = #tpu.dot_dimension_numbers<[1], [0], [0], [1], [0, 0, 1, 1], [], []>} : vector<128x16xf32>, vector<16x64xf32>, vector<128x64xf32> -> vector<128x64xf32>
    %37 = vector.broadcast %1 : vector<128x1xf32> to vector<128x64xf32>
    %38 = arith.addf %36, %37 : vector<128x64xf32>
    %cst_34 = arith.constant 0.000000e+00 : f32
    %39 = vector.broadcast %cst_34 : f32 to vector<128x64xf32>
    %40 = arith.maximumf %38, %39 : vector<128x64xf32>
    %cst_35 = arith.constant dense<0.000000e+00> : vector<32x64xf32>
    %41 = tpu.matmul %2, %40, %cst_35 {dimension_numbers = #tpu.dot_dimension_numbers<[1], [0], [0], [1], [0, 0, 1, 1], [], []>} : vector<32x128xf32>, vector<128x64xf32>, vector<32x64xf32> -> vector<32x64xf32>
    %42 = vector.broadcast %3 : vector<32x1xf32> to vector<32x64xf32>
    %43 = arith.addf %41, %42 : vector<32x64xf32>
    %cst_36 = arith.constant 0.000000e+00 : f32
    %44 = vector.broadcast %cst_36 : f32 to vector<32x64xf32>
    %45 = arith.maximumf %43, %44 : vector<32x64xf32>
    %cst_37 = arith.constant dense<0.000000e+00> : vector<128x64xf32>
    %46 = tpu.matmul %4, %45, %cst_37 {dimension_numbers = #tpu.dot_dimension_numbers<[1], [0], [0], [1], [0, 0, 1, 1], [], []>} : vector<128x32xf32>, vector<32x64xf32>, vector<128x64xf32> -> vector<128x64xf32>
    %47 = vector.broadcast %35 : vector<128x1xf32> to vector<128x64xf32>
    %48 = arith.addf %46, %47 : vector<128x64xf32>
    %cst_38 = arith.constant 0.000000e+00 : f32
    %49 = vector.broadcast %cst_38 : f32 to vector<128x64xf32>
    %50 = arith.maximumf %48, %49 : vector<128x64xf32>
    %cst_39 = arith.constant dense<0.000000e+00> : vector<32x64xf32>
    %51 = tpu.matmul %5, %50, %cst_39 {dimension_numbers = #tpu.dot_dimension_numbers<[1], [0], [0], [1], [0, 0, 1, 1], [], []>} : vector<32x128xf32>, vector<128x64xf32>, vector<32x64xf32> -> vector<32x64xf32>
    %52 = vector.broadcast %6 : vector<32x1xf32> to vector<32x64xf32>
    %53 = arith.addf %51, %52 : vector<32x64xf32>
    %c1_40 = arith.constant 1 : index
    %c0_41 = arith.constant 0 : index
    %c0_42 = arith.constant 0 : index
    %54 = vector.load %arg10[%c1_40, %c0_41, %c0_42] : memref<2x32x64xf32, #tpu.memory_space<vmem>>, vector<1x32x64xf32>
    %55 = vector.shape_cast %54 : vector<1x32x64xf32> to vector<32x64xf32>
    %56 = vector.shape_cast %53 : vector<32x64xf32> to vector<1x32x64xf32>
    tpu.vector_store %arg10[%c1_40, %c0_41, %c0_42], %56 {strides = array<i32>} : memref<2x32x64xf32, #tpu.memory_space<vmem>>, vector<1x32x64xf32>,
    return
  }
  func.func @transform_0(%arg0: i32) -> (i32, i32, i32) {
    %c0_i32 = arith.constant 0 : i32
    %c0_i32_0 = arith.constant 0 : i32
    %c0_i32_1 = arith.constant 0 : i32
    return %arg0, %c0_i32, %c0_i32_0 : i32, i32, i32
  }
  func.func @transform_1(%arg0: i32) -> (i32, i32, i32) {
    %c0_i32 = arith.constant 0 : i32
    %c0_i32_0 = arith.constant 0 : i32
    %c0_i32_1 = arith.constant 0 : i32
    return %arg0, %c0_i32, %c0_i32_0 : i32, i32, i32
  }
  func.func @transform_2(%arg0: i32) -> (i32, i32) {
    %c0_i32 = arith.constant 0 : i32
    %c0_i32_0 = arith.constant 0 : i32
    %c0_i32_1 = arith.constant 0 : i32
    return %c0_i32, %c0_i32_0 : i32, i32
  }
  func.func @transform_3(%arg0: i32) -> (i32, i32) {
    %c0_i32 = arith.constant 0 : i32
    %c0_i32_0 = arith.constant 0 : i32
    %c0_i32_1 = arith.constant 0 : i32
    return %c0_i32, %c0_i32_0 : i32, i32
  }
  func.func @transform_4(%arg0: i32) -> (i32, i32) {
    %c0_i32 = arith.constant 0 : i32
    %c0_i32_0 = arith.constant 0 : i32
    %c0_i32_1 = arith.constant 0 : i32
    return %c0_i32, %c0_i32_0 : i32, i32
  }
  func.func @transform_5(%arg0: i32) -> (i32, i32) {
    %c0_i32 = arith.constant 0 : i32
    %c0_i32_0 = arith.constant 0 : i32
    %c0_i32_1 = arith.constant 0 : i32
    return %c0_i32, %c0_i32_0 : i32, i32
  }
  func.func @transform_6(%arg0: i32) -> (i32, i32) {
    %c0_i32 = arith.constant 0 : i32
    %c0_i32_0 = arith.constant 0 : i32
    %c0_i32_1 = arith.constant 0 : i32
    return %c0_i32, %c0_i32_0 : i32, i32
  }
  func.func @transform_7(%arg0: i32) -> (i32, i32) {
    %c0_i32 = arith.constant 0 : i32
    %c0_i32_0 = arith.constant 0 : i32
    %c0_i32_1 = arith.constant 0 : i32
    return %c0_i32, %c0_i32_0 : i32, i32
  }
  func.func @transform_8(%arg0: i32) -> (i32, i32) {
    %c0_i32 = arith.constant 0 : i32
    %c0_i32_0 = arith.constant 0 : i32
    %c0_i32_1 = arith.constant 0 : i32
    return %c0_i32, %c0_i32_0 : i32, i32
  }
  func.func @transform_9(%arg0: i32) -> (i32, i32, i32) {
    %c0_i32 = arith.constant 0 : i32
    %c0_i32_0 = arith.constant 0 : i32
    %c0_i32_1 = arith.constant 0 : i32
    return %arg0, %c0_i32, %c0_i32_0 : i32, i32, i32
  }
}

</mosaic_0001>

<llo_original>
// kernel: forward.1
$region0: #{forward.1}
  #allocation0 [shape = 'u32[]', space=smem, size = 0x4, offset = 0x4, fixed_abs, tag = 'smem constant byte address 0x4 - core index']
  #allocation1 [shape = 'u32[144,128]{1,0:T(1,128)}', space=vmem, size = 0x12000, scoped, tag = 'internal scratch']
  %s0 = inlined_call_operand.vmem [shape: f32[4,16,64], index: 0, kind: input, shape index: {}]
  %s1 = inlined_call_operand.vmem [shape: f32[4,128,1], index: 1, kind: input, shape index: {}]
  %s2 = inlined_call_operand.vmem [shape: f32[128,16], index: 2, kind: input, shape index: {}]
  %s3 = inlined_call_operand.vmem [shape: f32[128,1], index: 3, kind: input, shape index: {}]
  %s4 = inlined_call_operand.vmem [shape: f32[32,128], index: 4, kind: input, shape index: {}]
  %s5 = inlined_call_operand.vmem [shape: f32[32,1], index: 5, kind: input, shape index: {}]
  %s6 = inlined_call_operand.vmem [shape: f32[128,32], index: 6, kind: input, shape index: {}]
  %s7 = inlined_call_operand.vmem [shape: f32[32,128], index: 7, kind: input, shape index: {}]
  %s8 = inlined_call_operand.vmem [shape: f32[32,1], index: 8, kind: input, shape index: {}]
  %s9 = inlined_call_operand.vmem [shape: f32[4,32,64], index: 9, kind: output, shape index: {}]
  %s10 = sld [smem:[#allocation0]]
  $region69: #{forward.1} parent=0
    _
  %s12 = ssub.s32 1, %s10
  %s13 = scalar_select 0, %s12, %s10
  loop: start=0, step=1, limit=4
  $region2: #{forward.1} parent=0 // loop_pre_header
    _
  $region3: #{forward.1} parent=0 // loop_header
    %s15 = sphi 0, %s19
    %p16 = scmp.ge.s32.totalorder %s15, 4
    %s25 = sphi 0, %s27
    %s28 = sphi 0, %s25
    %s29 = sphi 0, %s28
    %s45 = sphi 0, %s29
    %s51 = sphi 0, %s53
    %s54 = sphi 0, %s51
    %s55 = sphi 0, %s54
    %s71 = sphi 0, %s55
    %s75 = sphi 0, %s75
    %s77 = sphi 0, %s75
    %s78 = sphi 0, %s77
    %s92 = sphi 0, %s78
    %s96 = sphi 0, %s96
    %s98 = sphi 0, %s96
    %s99 = sphi 0, %s98
    %s113 = sphi 0, %s99
    %s117 = sphi 0, %s117
    %s119 = sphi 0, %s117
    %s120 = sphi 0, %s119
    %s134 = sphi 0, %s120
    %s138 = sphi 0, %s138
    %s140 = sphi 0, %s138
    %s141 = sphi 0, %s140
    %s155 = sphi 0, %s141
    %s159 = sphi 0, %s159
    %s161 = sphi 0, %s159
    %s162 = sphi 0, %s161
    %s176 = sphi 0, %s162
    %s180 = sphi 0, %s180
    %s182 = sphi 0, %s180
    %s183 = sphi 0, %s182
    %s197 = sphi 0, %s183
    %s201 = sphi 0, %s201
    %s203 = sphi 0, %s201
    %s204 = sphi 0, %s203
    %s218 = sphi 0, %s204
    %s224 = sphi 0, %s226
    %s227 = sphi 0, %s224
    %s228 = sphi 0, %s227
    %s244 = sphi 0, %s228
  $region4: #{forward.1} parent=0 // loop_header_branch
    %18 = sbr.rel (%p16) target = $region8
  $region5: #{forward.1} parent=0 // loop_body
    %s20 = ssub.s32 %s15, 1
    %s21 = ssub.s32 %s15, 2
    %s22 = sadd.s32 %s15, 1
    %s23 = ssub.s32 %s15, %s22
    %p24 = scmp.eq.s32.totalorder %s23, 0
    %s26 = sadd.s32 %s25, 1
    %s27 = scalar_select %p24, %s25, %s26
    %p30 = pneg %p24
    %p31 = scmp.eq.s32.totalorder %s15, 1
    %p32 = por %p30, %p31
    %p33 = scmp.ne.s32.totalorder %s25, %s28
    %p34 = scmp.eq.s32.totalorder %s15, 0
    %p35 = por %p33, %p34
    %p36 = scmp.ne.s32.totalorder %s25, %s28
    %p37 = scmp.eq.s32.totalorder %s20, 1
    %p38 = por %p36, %p37
    %p39 = scmp.ne.s32.totalorder %s28, %s29
    %p40 = scmp.eq.s32.totalorder %s20, 0
    %p41 = por %p39, %p40
    %p42 = scmp.ne.s32.totalorder %s28, %s29
    %p43 = scmp.eq.s32.totalorder %s21, 1
    %p44 = por %p42, %p43
    %p46 = scmp.ne.s32.totalorder %s29, %s45
    %p47 = scmp.eq.s32.totalorder %s21, 0
    %p48 = por %p46, %p47
    %s49 = ssub.s32 %s15, %s22
    %p50 = scmp.eq.s32.totalorder %s49, 0
    %s52 = sadd.s32 %s51, 1
    %s53 = scalar_select %p50, %s51, %s52
    %p56 = pneg %p50
    %p57 = scmp.eq.s32.totalorder %s15, 1
    %p58 = por %p56, %p57
    %p59 = scmp.ne.s32.totalorder %s51, %s54
    %p60 = scmp.eq.s32.totalorder %s15, 0
    %p61 = por %p59, %p60
    %p62 = scmp.ne.s32.totalorder %s51, %s54
    %p63 = scmp.eq.s32.totalorder %s20, 1
    %p64 = por %p62, %p63
    %p65 = scmp.ne.s32.totalorder %s54, %s55
    %p66 = scmp.eq.s32.totalorder %s20, 0
    %p67 = por %p65, %p66
    %p68 = scmp.ne.s32.totalorder %s54, %s55
    %p69 = scmp.eq.s32.totalorder %s21, 1
    %p70 = por %p68, %p69
    %p72 = scmp.ne.s32.totalorder %s55, %s71
    %p73 = scmp.eq.s32.totalorder %s21, 0
    %p74 = por %p72, %p73
    %s76 = sadd.s32 %s75, 1
    %p79 = scmp.eq.s32.totalorder %s15, 1
    %p80 = scmp.ne.s32.totalorder %s75, %s77
    %p81 = scmp.eq.s32.totalorder %s15, 0
    %p82 = por %p80, %p81
    %p83 = scmp.ne.s32.totalorder %s75, %s77
    %p84 = scmp.eq.s32.totalorder %s20, 1
    %p85 = por %p83, %p84
    %p86 = scmp.ne.s32.totalorder %s77, %s78
    %p87 = scmp.eq.s32.totalorder %s20, 0
    %p88 = por %p86, %p87
    %p89 = scmp.ne.s32.totalorder %s77, %s78
    %p90 = scmp.eq.s32.totalorder %s21, 1
    %p91 = por %p89, %p90
    %p93 = scmp.ne.s32.totalorder %s78, %s92
    %p94 = scmp.eq.s32.totalorder %s21, 0
    %p95 = por %p93, %p94
    %s97 = sadd.s32 %s96, 1
    %p100 = scmp.eq.s32.totalorder %s15, 1
    %p101 = scmp.ne.s32.totalorder %s96, %s98
    %p102 = scmp.eq.s32.totalorder %s15, 0
    %p103 = por %p101, %p102
    %p104 = scmp.ne.s32.totalorder %s96, %s98
    %p105 = scmp.eq.s32.totalorder %s20, 1
    %p106 = por %p104, %p105
    %p107 = scmp.ne.s32.totalorder %s98, %s99
    %p108 = scmp.eq.s32.totalorder %s20, 0
    %p109 = por %p107, %p108
    %p110 = scmp.ne.s32.totalorder %s98, %s99
    %p111 = scmp.eq.s32.totalorder %s21, 1
    %p112 = por %p110, %p111
    %p114 = scmp.ne.s32.totalorder %s99, %s113
    %p115 = scmp.eq.s32.totalorder %s21, 0
    %p116 = por %p114, %p115
    %s118 = sadd.s32 %s117, 1
    %p121 = scmp.eq.s32.totalorder %s15, 1
    %p122 = scmp.ne.s32.totalorder %s117, %s119
    %p123 = scmp.eq.s32.totalorder %s15, 0
    %p124 = por %p122, %p123
    %p125 = scmp.ne.s32.totalorder %s117, %s119
    %p126 = scmp.eq.s32.totalorder %s20, 1
    %p127 = por %p125, %p126
    %p128 = scmp.ne.s32.totalorder %s119, %s120
    %p129 = scmp.eq.s32.totalorder %s20, 0
    %p130 = por %p128, %p129
    %p131 = scmp.ne.s32.totalorder %s119, %s120
    %p132 = scmp.eq.s32.totalorder %s21, 1
    %p133 = por %p131, %p132
    %p135 = scmp.ne.s32.totalorder %s120, %s134
    %p136 = scmp.eq.s32.totalorder %s21, 0
    %p137 = por %p135, %p136
    %s139 = sadd.s32 %s138, 1
    %p142 = scmp.eq.s32.totalorder %s15, 1
    %p143 = scmp.ne.s32.totalorder %s138, %s140
    %p144 = scmp.eq.s32.totalorder %s15, 0
    %p145 = por %p143, %p144
    %p146 = scmp.ne.s32.totalorder %s138, %s140
    %p147 = scmp.eq.s32.totalorder %s20, 1
    %p148 = por %p146, %p147
    %p149 = scmp.ne.s32.totalorder %s140, %s141
    %p150 = scmp.eq.s32.totalorder %s20, 0
    %p151 = por %p149, %p150
    %p152 = scmp.ne.s32.totalorder %s140, %s141
    %p153 = scmp.eq.s32.totalorder %s21, 1
    %p154 = por %p152, %p153
    %p156 = scmp.ne.s32.totalorder %s141, %s155
    %p157 = scmp.eq.s32.totalorder %s21, 0
    %p158 = por %p156, %p157
    %s160 = sadd.s32 %s159, 1
    %p163 = scmp.eq.s32.totalorder %s15, 1
    %p164 = scmp.ne.s32.totalorder %s159, %s161
    %p165 = scmp.eq.s32.totalorder %s15, 0
    %p166 = por %p164, %p165
    %p167 = scmp.ne.s32.totalorder %s159, %s161
    %p168 = scmp.eq.s32.totalorder %s20, 1
    %p169 = por %p167, %p168
    %p170 = scmp.ne.s32.totalorder %s161, %s162
    %p171 = scmp.eq.s32.totalorder %s20, 0
    %p172 = por %p170, %p171
    %p173 = scmp.ne.s32.totalorder %s161, %s162
    %p174 = scmp.eq.s32.totalorder %s21, 1
    %p175 = por %p173, %p174
    %p177 = scmp.ne.s32.totalorder %s162, %s176
    %p178 = scmp.eq.s32.totalorder %s21, 0
    %p179 = por %p177, %p178
    %s181 = sadd.s32 %s180, 1
    %p184 = scmp.eq.s32.totalorder %s15, 1
    %p185 = scmp.ne.s32.totalorder %s180, %s182
    %p186 = scmp.eq.s32.totalorder %s15, 0
    %p187 = por %p185, %p186
    %p188 = scmp.ne.s32.totalorder %s180, %s182
    %p189 = scmp.eq.s32.totalorder %s20, 1
    %p190 = por %p188, %p189
    %p191 = scmp.ne.s32.totalorder %s182, %s183
    %p192 = scmp.eq.s32.totalorder %s20, 0
    %p193 = por %p191, %p192
    %p194 = scmp.ne.s32.totalorder %s182, %s183
    %p195 = scmp.eq.s32.totalorder %s21, 1
    %p196 = por %p194, %p195
    %p198 = scmp.ne.s32.totalorder %s183, %s197
    %p199 = scmp.eq.s32.totalorder %s21, 0
    %p200 = por %p198, %p199
    %s202 = sadd.s32 %s201, 1
    %p205 = scmp.eq.s32.totalorder %s15, 1
    %p206 = scmp.ne.s32.totalorder %s201, %s203
    %p207 = scmp.eq.s32.totalorder %s15, 0
    %p208 = por %p206, %p207
    %p209 = scmp.ne.s32.totalorder %s201, %s203
    %p210 = scmp.eq.s32.totalorder %s20, 1
    %p211 = por %p209, %p210
    %p212 = scmp.ne.s32.totalorder %s203, %s204
    %p213 = scmp.eq.s32.totalorder %s20, 0
    %p214 = por %p212, %p213
    %p215 = scmp.ne.s32.totalorder %s203, %s204
    %p216 = scmp.eq.s32.totalorder %s21, 1
    %p217 = por %p215, %p216
    %p219 = scmp.ne.s32.totalorder %s204, %s218
    %p220 = scmp.eq.s32.totalorder %s21, 0
    %p221 = por %p219, %p220
    %s222 = ssub.s32 %s15, %s22
    %p223 = scmp.eq.s32.totalorder %s222, 0
    %s225 = sadd.s32 %s224, 1
    %s226 = scalar_select %p223, %s224, %s225
    %p229 = pneg %p223
    %p230 = scmp.eq.s32.totalorder %s15, 1
    %p231 = por %p229, %p230
    %p232 = scmp.ne.s32.totalorder %s224, %s227
    %p233 = scmp.eq.s32.totalorder %s15, 0
    %p234 = por %p232, %p233
    %p235 = scmp.ne.s32.totalorder %s224, %s227
    %p236 = scmp.eq.s32.totalorder %s20, 1
    %p237 = por %p235, %p236
    %p238 = scmp.ne.s32.totalorder %s227, %s228
    %p239 = scmp.eq.s32.totalorder %s20, 0
    %p240 = por %p238, %p239
    %p241 = scmp.ne.s32.totalorder %s227, %s228
    %p242 = scmp.eq.s32.totalorder %s21, 1
    %p243 = por %p241, %p242
    %p245 = scmp.ne.s32.totalorder %s228, %s244
    %p246 = scmp.eq.s32.totalorder %s21, 0
    %p247 = por %p245, %p246
    %p248 = scmp.le.s32.totalorder 1, %s15
    %p249 = scmp.lt.s32.totalorder %s15, 3
    %p250 = pnand %p248, %p249
    %p251 = pneg %p250
    // Predicated region
    $region9: #{forward.1} parent=5 // pred_check
      _
    $region10: #{forward.1} parent=5 // pred_check_branch
      %253 = sbr.rel (%p250) target = $region12
    $region11: #{forward.1} parent=5 // pred_region
      %s254 = ssub.s32 %s15, 1
      // Predicated region
      $region13: #{forward.1} parent=11 // pred_check
        %p255 = pneg %p88
      $region14: #{forward.1} parent=11 // pred_check_branch
        %257 = sbr.rel (%p255) target = $region16
      $region15: #{forward.1} parent=11 // pred_region
        _
      $region16: #{forward.1} parent=11 // pred_fallthru
        _
      // Predicated region
      $region17: #{forward.1} parent=11 // pred_check
        %p258 = pneg %p109
      $region18: #{forward.1} parent=11 // pred_check_branch
        %260 = sbr.rel (%p258) target = $region20
      $region19: #{forward.1} parent=11 // pred_region
        _
      $region20: #{forward.1} parent=11 // pred_fallthru
        _
      // Predicated region
      $region21: #{forward.1} parent=11 // pred_check
        %p261 = pneg %p130
      $region22: #{forward.1} parent=11 // pred_check_branch
        %263 = sbr.rel (%p261) target = $region24
      $region23: #{forward.1} parent=11 // pred_region
        _
      $region24: #{forward.1} parent=11 // pred_fallthru
        _
      // Predicated region
      $region25: #{forward.1} parent=11 // pred_check
        %p264 = pneg %p151
      $region26: #{forward.1} parent=11 // pred_check_branch
        %266 = sbr.rel (%p264) target = $region28
      $region27: #{forward.1} parent=11 // pred_region
        _
      $region28: #{forward.1} parent=11 // pred_fallthru
        _
      // Predicated region
      $region29: #{forward.1} parent=11 // pred_check
        %p267 = pneg %p172
      $region30: #{forward.1} parent=11 // pred_check_branch
        %269 = sbr.rel (%p267) target = $region32
      $region31: #{forward.1} parent=11 // pred_region
        _
      $region32: #{forward.1} parent=11 // pred_fallthru
        _
      // Predicated region
      $region33: #{forward.1} parent=11 // pred_check
        %p270 = pneg %p193
      $region34: #{forward.1} parent=11 // pred_check_branch
        %272 = sbr.rel (%p270) target = $region36
      $region35: #{forward.1} parent=11 // pred_region
        _
      $region36: #{forward.1} parent=11 // pred_fallthru
        _
      // Predicated region
      $region37: #{forward.1} parent=11 // pred_check
        %p273 = pneg %p214
      $region38: #{forward.1} parent=11 // pred_check_branch
        %275 = sbr.rel (%p273) target = $region40
      $region39: #{forward.1} parent=11 // pred_region
        _
      $region40: #{forward.1} parent=11 // pred_fallthru
        _
    $region12: #{forward.1} parent=5 // pred_fallthru
      _
    %p276 = scmp.lt.s32.totalorder %s15, 2
    // Predicated region
    $region41: #{forward.1} parent=5 // pred_check
      %p277 = pneg %p276
    $region42: #{forward.1} parent=5 // pred_check_branch
      %279 = sbr.rel (%p277) target = $region44
    $region43: #{forward.1} parent=5 // pred_region
      // Predicated region
      $region45: #{forward.1} parent=43 // pred_check
        %p280 = pneg %p35
      $region46: #{forward.1} parent=43 // pred_check_branch
        %282 = sbr.rel (%p280) target = $region48
      $region47: #{forward.1} parent=43 // pred_region
        %s283 = smul.u32 2, %s15
        %p284 = scmp.lt.s32.totalorder %s283, 3
        %s285 = scalar_select %p284, %s283, 3
        %s286 = smul.addr %s285, 2
        %s287 = smul.addr %s286, 8
        %s288 = scalar_lea.vmem %s0, %s287
        %s289 = smul.u32 2, %s15
      $region48: #{forward.1} parent=43 // pred_fallthru
        _
      // Predicated region
      $region49: #{forward.1} parent=43 // pred_check
        %p290 = pneg %p61
      $region50: #{forward.1} parent=43 // pred_check_branch
        %292 = sbr.rel (%p290) target = $region52
      $region51: #{forward.1} parent=43 // pred_region
        %s293 = smul.u32 2, %s15
        %p294 = scmp.lt.s32.totalorder %s293, 3
        %s295 = scalar_select %p294, %s293, 3
        %s296 = smul.addr %s295, 16
        %s297 = smul.addr %s296, 8
        %s298 = scalar_lea.vmem %s1, %s297
        %s299 = smul.u32 2, %s15
      $region52: #{forward.1} parent=43 // pred_fallthru
        _
    $region44: #{forward.1} parent=5 // pred_fallthru
      _
    %p300 = scmp.le.s32.totalorder 1, %s15
    %p301 = scmp.lt.s32.totalorder %s15, 3
    %p302 = pnand %p300, %p301
    %p303 = pneg %p302
    // Predicated region
    $region53: #{forward.1} parent=5 // pred_check
      _
    $region54: #{forward.1} parent=5 // pred_check_branch
      %305 = sbr.rel (%p302) target = $region56
    $region55: #{forward.1} parent=5 // pred_region
      %s306 = ssub.s32 %s15, 1
      %s307 = smul.u32 2, %s20
      %p308 = scmp.lt.s32.totalorder %s307, 3
      %s309 = scalar_select %p308, %s307, 3
      %s310 = smul.addr %s309, 2
      %s311 = smul.addr %s310, 8
      %s312 = scalar_lea.vmem %s0, %s311
      %p313 = pneg %p41
      %p314 = pneg %p38
      %s315 = smul.u32 2, %s20
      %p316 = scmp.lt.s32.totalorder %s315, 3
      %s317 = scalar_select %p316, %s315, 3
      %s318 = smul.addr %s317, 16
      %s319 = smul.addr %s318, 8
      %s320 = scalar_lea.vmem %s1, %s319
      %p321 = pneg %p67
      %p322 = pneg %p64
      %p323 = pneg %p88
      %p324 = pneg %p85
      %p325 = pneg %p109
      %p326 = pneg %p106
      %p327 = pneg %p130
      %p328 = pneg %p127
      %p329 = pneg %p151
      %p330 = pneg %p148
      %p331 = pneg %p172
      %p332 = pneg %p169
      %p333 = pneg %p193
      %p334 = pneg %p190
      %p335 = pneg %p214
      %p336 = pneg %p211
      %p337 = pneg %p240
      %p338 = pneg %p237
      %s339 = smul.u32 2, %s20
      %p340 = scmp.lt.s32.totalorder %s339, 3
      %s341 = scalar_select %p340, %s339, 3
      %s342 = smul.addr %s341, 4
      %s343 = smul.addr %s342, 8
      %s344 = scalar_lea.vmem %s9, %s343
      %s345 = smul.u32 2, %s20
      %p346 = scmp.lt.s32.totalorder %s345, 3
      %s347 = scalar_select %p346, %s345, 3
      %s348 = smul.addr %s347, 2
      %s349 = smul.addr %s348, 8
      %s350 = scalar_lea.vmem %s0, %s349
      %s351 = smul.u32 2, %s20
      %s352 = smul.u32 2, %s20
      %p353 = scmp.lt.s32.totalorder %s352, 3
      %s354 = scalar_select %p353, %s352, 3
      %s355 = smul.addr %s354, 16
      %s356 = smul.addr %s355, 8
      %s357 = scalar_lea.vmem %s1, %s356
      %s358 = smul.u32 2, %s20
      %s359 = smul.u32 2, %s20
      %p360 = scmp.lt.s32.totalorder %s359, 3
      %s361 = scalar_select %p360, %s359, 3
      %s362 = smul.addr %s361, 4
      %s363 = smul.addr %s362, 8
      %s364 = scalar_lea.vmem %s9, %s363
      %s365 = smul.u32 2, %s20
      %v366 = vld [vmem:[%s2] sm:$0xff]
      %v367 = vld [vmem:[%s2 + $0x8] sm:$0xff]
      %v368 = vld [vmem:[%s2 + $0x10] sm:$0xff]
      %v369 = vld [vmem:[%s2 + $0x18] sm:$0xff]
      %v370 = vld [vmem:[%s2 + $0x20] sm:$0xff]
      %v371 = vld [vmem:[%s2 + $0x28] sm:$0xff]
      %v372 = vld [vmem:[%s2 + $0x30] sm:$0xff]
      %v373 = vld [vmem:[%s2 + $0x38] sm:$0xff]
      %v374 = vld [vmem:[%s2 + $0x40] sm:$0xff]
      %v375 = vld [vmem:[%s2 + $0x48] sm:$0xff]
      %v376 = vld [vmem:[%s2 + $0x50] sm:$0xff]
      %v377 = vld [vmem:[%s2 + $0x58] sm:$0xff]
      %v378 = vld [vmem:[%s2 + $0x60] sm:$0xff]
      %v379 = vld [vmem:[%s2 + $0x68] sm:$0xff]
      %v380 = vld [vmem:[%s2 + $0x70] sm:$0xff]
      %v381 = vld [vmem:[%s2 + $0x78] sm:$0xff]
      %v382 = vld [vmem:[%s3] sm:$0xff]
      %v383 = vld [vmem:[%s3 + $0x8] sm:$0xff]
      %v384 = vld [vmem:[%s3 + $0x10] sm:$0xff]
      %v385 = vld [vmem:[%s3 + $0x18] sm:$0xff]
      %v386 = vld [vmem:[%s3 + $0x20] sm:$0xff]
      %v387 = vld [vmem:[%s3 + $0x28] sm:$0xff]
      %v388 = vld [vmem:[%s3 + $0x30] sm:$0xff]
      %v389 = vld [vmem:[%s3 + $0x38] sm:$0xff]
      %v390 = vld [vmem:[%s3 + $0x40] sm:$0xff]
      %v391 = vld [vmem:[%s3 + $0x48] sm:$0xff]
      %v392 = vld [vmem:[%s3 + $0x50] sm:$0xff]
      %v393 = vld [vmem:[%s3 + $0x58] sm:$0xff]
      %v394 = vld [vmem:[%s3 + $0x60] sm:$0xff]
      %v395 = vld [vmem:[%s3 + $0x68] sm:$0xff]
      %v396 = vld [vmem:[%s3 + $0x70] sm:$0xff]
      %v397 = vld [vmem:[%s3 + $0x78] sm:$0xff]
      %v398 = vld [vmem:[%s4] sm:$0xff]
      %v399 = vld [vmem:[%s4 + $0x8] sm:$0xff]
      %v400 = vld [vmem:[%s4 + $0x10] sm:$0xff]
      %v401 = vld [vmem:[%s4 + $0x18] sm:$0xff]
      %v402 = vld [vmem:[%s5] sm:$0xff]
      %v403 = vld [vmem:[%s5 + $0x8] sm:$0xff]
      %v404 = vld [vmem:[%s5 + $0x10] sm:$0xff]
      %v405 = vld [vmem:[%s5 + $0x18] sm:$0xff]
      %v406 = vld [vmem:[%s6] sm:$0xff]
      %v407 = vld [vmem:[%s6 + $0x8] sm:$0xff]
      %v408 = vld [vmem:[%s6 + $0x10] sm:$0xff]
      %v409 = vld [vmem:[%s6 + $0x18] sm:$0xff]
      %v410 = vld [vmem:[%s6 + $0x20] sm:$0xff]
      %v411 = vld [vmem:[%s6 + $0x28] sm:$0xff]
      %v412 = vld [vmem:[%s6 + $0x30] sm:$0xff]
      %v413 = vld [vmem:[%s6 + $0x38] sm:$0xff]
      %v414 = vld [vmem:[%s6 + $0x40] sm:$0xff]
      %v415 = vld [vmem:[%s6 + $0x48] sm:$0xff]
      %v416 = vld [vmem:[%s6 + $0x50] sm:$0xff]
      %v417 = vld [vmem:[%s6 + $0x58] sm:$0xff]
      %v418 = vld [vmem:[%s6 + $0x60] sm:$0xff]
      %v419 = vld [vmem:[%s6 + $0x68] sm:$0xff]
      %v420 = vld [vmem:[%s6 + $0x70] sm:$0xff]
      %v421 = vld [vmem:[%s6 + $0x78] sm:$0xff]
      %v422 = vld [vmem:[%s7] sm:$0xff]
      %v423 = vld [vmem:[%s7 + $0x8] sm:$0xff]
      %v424 = vld [vmem:[%s7 + $0x10] sm:$0xff]
      %v425 = vld [vmem:[%s7 + $0x18] sm:$0xff]
      %v426 = vld [vmem:[%s8] sm:$0xff]
      %v427 = vld [vmem:[%s8 + $0x8] sm:$0xff]
      %v428 = vld [vmem:[%s8 + $0x10] sm:$0xff]
      %v429 = vld [vmem:[%s8 + $0x18] sm:$0xff]
      %v430 = vld [vmem:[%s350] sm:$0xff]
      %v431 = vld [vmem:[%s350 + $0x8] sm:$0xff]
      %v432 = vld [vmem:[%s357] sm:$0xff]
      %v433 = vld [vmem:[%s357 + $0x8] sm:$0xff]
      %v434 = vld [vmem:[%s357 + $0x10] sm:$0xff]
      %v435 = vld [vmem:[%s357 + $0x18] sm:$0xff]
      %v436 = vld [vmem:[%s357 + $0x20] sm:$0xff]
      %v437 = vld [vmem:[%s357 + $0x28] sm:$0xff]
      %v438 = vld [vmem:[%s357 + $0x30] sm:$0xff]
      %v439 = vld [vmem:[%s357 + $0x38] sm:$0xff]
      %v440 = vld [vmem:[%s357 + $0x40] sm:$0xff]
      %v441 = vld [vmem:[%s357 + $0x48] sm:$0xff]
      %v442 = vld [vmem:[%s357 + $0x50] sm:$0xff]
      %v443 = vld [vmem:[%s357 + $0x58] sm:$0xff]
      %v444 = vld [vmem:[%s357 + $0x60] sm:$0xff]
      %v445 = vld [vmem:[%s357 + $0x68] sm:$0xff]
      %v446 = vld [vmem:[%s357 + $0x70] sm:$0xff]
      %v447 = vld [vmem:[%s357 + $0x78] sm:$0xff]
      %449 = vset.pattern.permute.xlu0 0
      %450 = vperm.xlu0 %449, %v382
      %v451 = vpop.permute.xlu0 %450
      %454 = vset.pattern.permute.xlu0 0
      %455 = vperm.xlu0 %454, %v383
      %v456 = vpop.permute.xlu0 %455
      %459 = vset.pattern.permute.xlu0 0
      %460 = vperm.xlu0 %459, %v384
      %v461 = vpop.permute.xlu0 %460
      %464 = vset.pattern.permute.xlu0 0
      %465 = vperm.xlu0 %464, %v385
      %v466 = vpop.permute.xlu0 %465
      %469 = vset.pattern.permute.xlu0 0
      %470 = vperm.xlu0 %469, %v386
      %v471 = vpop.permute.xlu0 %470
      %474 = vset.pattern.permute.xlu0 0
      %475 = vperm.xlu0 %474, %v387
      %v476 = vpop.permute.xlu0 %475
      %479 = vset.pattern.permute.xlu0 0
      %480 = vperm.xlu0 %479, %v388
      %v481 = vpop.permute.xlu0 %480
      %484 = vset.pattern.permute.xlu0 0
      %485 = vperm.xlu0 %484, %v389
      %v486 = vpop.permute.xlu0 %485
      %489 = vset.pattern.permute.xlu0 0
      %490 = vperm.xlu0 %489, %v390
      %v491 = vpop.permute.xlu0 %490
      %494 = vset.pattern.permute.xlu0 0
      %495 = vperm.xlu0 %494, %v391
      %v496 = vpop.permute.xlu0 %495
      %499 = vset.pattern.permute.xlu0 0
      %500 = vperm.xlu0 %499, %v392
      %v501 = vpop.permute.xlu0 %500
      %504 = vset.pattern.permute.xlu0 0
      %505 = vperm.xlu0 %504, %v393
      %v506 = vpop.permute.xlu0 %505
      %509 = vset.pattern.permute.xlu0 0
      %510 = vperm.xlu0 %509, %v394
      %v511 = vpop.permute.xlu0 %510
      %514 = vset.pattern.permute.xlu0 0
      %515 = vperm.xlu0 %514, %v395
      %v516 = vpop.permute.xlu0 %515
      %519 = vset.pattern.permute.xlu0 0
      %520 = vperm.xlu0 %519, %v396
      %v521 = vpop.permute.xlu0 %520
      %524 = vset.pattern.permute.xlu0 0
      %525 = vperm.xlu0 %524, %v397
      %v526 = vpop.permute.xlu0 %525
      %vm528 = vcmask 130048
      %v530 = vsel %vm528, %v366, 0
      %v533 = vsel %vm528, %v367, 0
      %v536 = vsel %vm528, %v368, 0
      %v539 = vsel %vm528, %v369, 0
      %v542 = vsel %vm528, %v370, 0
      %v545 = vsel %vm528, %v371, 0
      %v548 = vsel %vm528, %v372, 0
      %v551 = vsel %vm528, %v373, 0
      %v554 = vsel %vm528, %v374, 0
      %v557 = vsel %vm528, %v375, 0
      %v560 = vsel %vm528, %v376, 0
      %v563 = vsel %vm528, %v377, 0
      %v566 = vsel %vm528, %v378, 0
      %v569 = vsel %vm528, %v379, 0
      %v572 = vsel %vm528, %v380, 0
      %v575 = vsel %vm528, %v381, 0
      %577 = vmatprep.subr.mxu0 0.0
      %578 = vmatpush1.msra.mxu0 0.0
      %579 = vmatprep.subr.mxu0 0.0
      %580 = vmatpush1.msra.mxu0 0.0
      %581 = vmatprep.subr.mxu0 0.0
      %582 = vmatpush1.msra.mxu0 0.0
      %583 = vmatprep.subr.mxu0 0.0
      %584 = vmatpush1.msra.mxu0 0.0
      %585 = vmatprep.subr.mxu0 0.0
      %586 = vmatpush1.msra.mxu0 0.0
      %587 = vmatprep.subr.mxu0 0.0
      %588 = vmatpush1.msra.mxu0 0.0
      %589 = vmatprep.subr.mxu0 0.0
      %590 = vmatpush1.msra.mxu0 0.0
      %591 = vmatprep.subr.mxu0 0.0
      %592 = vmatpush1.msra.mxu0 0.0
      %593 = vmatprep.subr.mxu0 0.0
      %594 = vmatpush1.msra.mxu0 0.0
      %595 = vmatprep.subr.mxu0 0.0
      %596 = vmatpush1.msra.mxu0 0.0
      %597 = vmatprep.subr.mxu0 0.0
      %598 = vmatpush1.msra.mxu0 0.0
      %599 = vmatprep.subr.mxu0 0.0
      %600 = vmatpush1.msra.mxu0 0.0
      %601 = vmatprep.subr.mxu0 0.0
      %602 = vmatpush1.msra.mxu0 0.0
      %603 = vmatprep.subr.mxu0 0.0
      %604 = vmatpush1.msra.mxu0 0.0
      %605 = vmatprep.subr.mxu0 0.0
      %606 = vmatpush1.msra.mxu0 %v431
      %607 = vmatprep.subr.mxu0 0.0
      %608 = vmatpush1.msra.mxu0 %v430
      %609 = vmatprep.subr.mxu0 0.0
      %610 = vmatpush2.msra.mxu0 0.0
      %611 = vmatprep.subr.mxu0 0.0
      %612 = vmatpush2.msra.mxu0 0.0
      %613 = vmatprep.subr.mxu0 0.0
      %614 = vmatpush2.msra.mxu0 0.0
      %615 = vmatprep.subr.mxu0 0.0
      %616 = vmatpush2.msra.mxu0 0.0
      %617 = vmatprep.subr.mxu0 0.0
      %618 = vmatpush2.msra.mxu0 0.0
      %619 = vmatprep.subr.mxu0 0.0
      %620 = vmatpush2.msra.mxu0 0.0
      %621 = vmatprep.subr.mxu0 0.0
      %622 = vmatpush2.msra.mxu0 0.0
      %623 = vmatprep.subr.mxu0 0.0
      %624 = vmatpush2.msra.mxu0 0.0
      %625 = vmatprep.subr.mxu0 0.0
      %626 = vmatpush2.msra.mxu0 0.0
      %627 = vmatprep.subr.mxu0 0.0
      %628 = vmatpush2.msra.mxu0 0.0
      %629 = vmatprep.subr.mxu0 0.0
      %630 = vmatpush2.msra.mxu0 0.0
      %631 = vmatprep.subr.mxu0 0.0
      %632 = vmatpush2.msra.mxu0 0.0
      %633 = vmatprep.subr.mxu0 0.0
      %634 = vmatpush2.msra.mxu0 0.0
      %635 = vmatprep.subr.mxu0 0.0
      %636 = vmatpush2.msra.mxu0 0.0
      %637 = vmatprep.subr.mxu0 0.0
      %638 = vmatpush2.msra.mxu0 0.0
      %639 = vmatprep.subr.mxu0 0.0
      %640 = vmatpush2.msra.mxu0 0.0
      %641 = vmatprep.mubr.f32.mxu0 0.0
      %642 = vmatmul.mubr.f32.gmra.mxu0 %v530
      %v643 = vpop.f32.mrf.mxu0
      %v644 = vadd.f32 %v451, %v643
      %v645 = vpop.f32.mrf.mxu0
      %646 = vmatprep.mubr.f32.mxu0 0.0
      %647 = vmatmul.mubr.f32.gmra.mxu0 %v533
      %v648 = vpop.f32.mrf.mxu0
      %v649 = vadd.f32 %v456, %v648
      %v650 = vpop.f32.mrf.mxu0
      %651 = vmatprep.mubr.f32.mxu0 0.0
      %652 = vmatmul.mubr.f32.gmra.mxu0 %v536
      %v653 = vpop.f32.mrf.mxu0
      %v654 = vadd.f32 %v461, %v653
      %v655 = vpop.f32.mrf.mxu0
      %656 = vmatprep.mubr.f32.mxu0 0.0
      %657 = vmatmul.mubr.f32.gmra.mxu0 %v539
      %v658 = vpop.f32.mrf.mxu0
      %v659 = vadd.f32 %v466, %v658
      %v660 = vpop.f32.mrf.mxu0
      %661 = vmatprep.mubr.f32.mxu0 0.0
      %662 = vmatmul.mubr.f32.gmra.mxu0 %v542
      %v663 = vpop.f32.mrf.mxu0
      %v664 = vadd.f32 %v471, %v663
      %v665 = vpop.f32.mrf.mxu0
      %666 = vmatprep.mubr.f32.mxu0 0.0
      %667 = vmatmul.mubr.f32.gmra.mxu0 %v545
      %v668 = vpop.f32.mrf.mxu0
      %v669 = vadd.f32 %v476, %v668
      %v670 = vpop.f32.mrf.mxu0
      %671 = vmatprep.mubr.f32.mxu0 0.0
      %672 = vmatmul.mubr.f32.gmra.mxu0 %v548
      %v673 = vpop.f32.mrf.mxu0
      %v674 = vadd.f32 %v481, %v673
      %v675 = vpop.f32.mrf.mxu0
      %676 = vmatprep.mubr.f32.mxu0 0.0
      %677 = vmatmul.mubr.f32.gmra.mxu0 %v551
      %v678 = vpop.f32.mrf.mxu0
      %v679 = vadd.f32 %v486, %v678
      %v680 = vpop.f32.mrf.mxu0
      %681 = vmatprep.mubr.f32.mxu0 0.0
      %682 = vmatmul.mubr.f32.gmra.mxu0 %v554
      %v683 = vpop.f32.mrf.mxu0
      %v684 = vadd.f32 %v491, %v683
      %v685 = vpop.f32.mrf.mxu0
      %686 = vmatprep.mubr.f32.mxu0 0.0
      %687 = vmatmul.mubr.f32.gmra.mxu0 %v557
      %v688 = vpop.f32.mrf.mxu0
      %v689 = vadd.f32 %v496, %v688
      %v690 = vpop.f32.mrf.mxu0
      %691 = vmatprep.mubr.f32.mxu0 0.0
      %692 = vmatmul.mubr.f32.gmra.mxu0 %v560
      %v693 = vpop.f32.mrf.mxu0
      %v694 = vadd.f32 %v501, %v693
      %v695 = vpop.f32.mrf.mxu0
      %696 = vmatprep.mubr.f32.mxu0 0.0
      %697 = vmatmul.mubr.f32.gmra.mxu0 %v563
      %v698 = vpop.f32.mrf.mxu0
      %v699 = vadd.f32 %v506, %v698
      %v700 = vpop.f32.mrf.mxu0
      %701 = vmatprep.mubr.f32.mxu0 0.0
      %702 = vmatmul.mubr.f32.gmra.mxu0 %v566
      %v703 = vpop.f32.mrf.mxu0
      %v704 = vadd.f32 %v511, %v703
      %v705 = vpop.f32.mrf.mxu0
      %706 = vmatprep.mubr.f32.mxu0 0.0
      %707 = vmatmul.mubr.f32.gmra.mxu0 %v569
      %v708 = vpop.f32.mrf.mxu0
      %v709 = vadd.f32 %v516, %v708
      %v710 = vpop.f32.mrf.mxu0
      %711 = vmatprep.mubr.f32.mxu0 0.0
      %712 = vmatmul.mubr.f32.gmra.mxu0 %v572
      %v713 = vpop.f32.mrf.mxu0
      %v714 = vadd.f32 %v521, %v713
      %v715 = vpop.f32.mrf.mxu0
      %716 = vmatprep.mubr.f32.mxu0 0.0
      %717 = vmatmul.mubr.f32.gmra.mxu0 %v575
      %v718 = vpop.f32.mrf.mxu0
      %v719 = vadd.f32 %v526, %v718
      %v720 = vpop.f32.mrf.mxu0
      %721 = vdwg.mxu0
      %v722 = vmax.f32 %v644, 0.0
      %v723 = vmax.f32 %v649, 0.0
      %v724 = vmax.f32 %v654, 0.0
      %v725 = vmax.f32 %v659, 0.0
      %v726 = vmax.f32 %v664, 0.0
      %v727 = vmax.f32 %v669, 0.0
      %v728 = vmax.f32 %v674, 0.0
      %v729 = vmax.f32 %v679, 0.0
      %v730 = vmax.f32 %v684, 0.0
      %v731 = vmax.f32 %v689, 0.0
      %v732 = vmax.f32 %v694, 0.0
      %v733 = vmax.f32 %v699, 0.0
      %v734 = vmax.f32 %v704, 0.0
      %v735 = vmax.f32 %v709, 0.0
      %v736 = vmax.f32 %v714, 0.0
      %v737 = vmax.f32 %v719, 0.0
      %739 = vset.pattern.permute.xlu0 0
      %740 = vperm.xlu0 %739, %v402
      %v741 = vpop.permute.xlu0 %740
      %744 = vset.pattern.permute.xlu0 0
      %745 = vperm.xlu0 %744, %v403
      %v746 = vpop.permute.xlu0 %745
      %749 = vset.pattern.permute.xlu0 0
      %750 = vperm.xlu0 %749, %v404
      %v751 = vpop.permute.xlu0 %750
      %754 = vset.pattern.permute.xlu0 0
      %755 = vperm.xlu0 %754, %v405
      %v756 = vpop.permute.xlu0 %755
      %758 = vmatprep.subr.mxu0 0.0
      %759 = vmatpush1.msra.mxu0 %v737
      %760 = vmatprep.subr.mxu0 0.0
      %761 = vmatpush1.msra.mxu0 %v736
      %762 = vmatprep.subr.mxu0 0.0
      %763 = vmatpush1.msra.mxu0 %v735
      %764 = vmatprep.subr.mxu0 0.0
      %765 = vmatpush1.msra.mxu0 %v734
      %766 = vmatprep.subr.mxu0 0.0
      %767 = vmatpush1.msra.mxu0 %v733
      %768 = vmatprep.subr.mxu0 0.0
      %769 = vmatpush1.msra.mxu0 %v732
      %770 = vmatprep.subr.mxu0 0.0
      %771 = vmatpush1.msra.mxu0 %v731
      %772 = vmatprep.subr.mxu0 0.0
      %773 = vmatpush1.msra.mxu0 %v730
      %774 = vmatprep.subr.mxu0 0.0
      %775 = vmatpush1.msra.mxu0 %v729
      %776 = vmatprep.subr.mxu0 0.0
      %777 = vmatpush1.msra.mxu0 %v728
      %778 = vmatprep.subr.mxu0 0.0
      %779 = vmatpush1.msra.mxu0 %v727
      %780 = vmatprep.subr.mxu0 0.0
      %781 = vmatpush1.msra.mxu0 %v726
      %782 = vmatprep.subr.mxu0 0.0
      %783 = vmatpush1.msra.mxu0 %v725
      %784 = vmatprep.subr.mxu0 0.0
      %785 = vmatpush1.msra.mxu0 %v724
      %786 = vmatprep.subr.mxu0 0.0
      %787 = vmatpush1.msra.mxu0 %v723
      %788 = vmatprep.subr.mxu0 0.0
      %789 = vmatpush1.msra.mxu0 %v722
      %790 = vmatprep.subr.mxu0 0.0
      %791 = vmatpush2.msra.mxu0 0.0
      %792 = vmatprep.subr.mxu0 0.0
      %793 = vmatpush2.msra.mxu0 0.0
      %794 = vmatprep.subr.mxu0 0.0
      %795 = vmatpush2.msra.mxu0 0.0
      %796 = vmatprep.subr.mxu0 0.0
      %797 = vmatpush2.msra.mxu0 0.0
      %798 = vmatprep.subr.mxu0 0.0
      %799 = vmatpush2.msra.mxu0 0.0
      %800 = vmatprep.subr.mxu0 0.0
      %801 = vmatpush2.msra.mxu0 0.0
      %802 = vmatprep.subr.mxu0 0.0
      %803 = vmatpush2.msra.mxu0 0.0
      %804 = vmatprep.subr.mxu0 0.0
      %805 = vmatpush2.msra.mxu0 0.0
      %806 = vmatprep.subr.mxu0 0.0
      %807 = vmatpush2.msra.mxu0 0.0
      %808 = vmatprep.subr.mxu0 0.0
      %809 = vmatpush2.msra.mxu0 0.0
      %810 = vmatprep.subr.mxu0 0.0
      %811 = vmatpush2.msra.mxu0 0.0
      %812 = vmatprep.subr.mxu0 0.0
      %813 = vmatpush2.msra.mxu0 0.0
      %814 = vmatprep.subr.mxu0 0.0
      %815 = vmatpush2.msra.mxu0 0.0
      %816 = vmatprep.subr.mxu0 0.0
      %817 = vmatpush2.msra.mxu0 0.0
      %818 = vmatprep.subr.mxu0 0.0
      %819 = vmatpush2.msra.mxu0 0.0
      %820 = vmatprep.subr.mxu0 0.0
      %821 = vmatpush2.msra.mxu0 0.0
      %822 = vmatprep.mubr.f32.mxu0 0.0
      %823 = vmatmul.mubr.f32.gmra.mxu0 %v398
      %v824 = vpop.f32.mrf.mxu0
      %v825 = vadd.f32 %v741, %v824
      %v826 = vpop.f32.mrf.mxu0
      %827 = vmatprep.mubr.f32.mxu0 0.0
      %828 = vmatmul.mubr.f32.gmra.mxu0 %v399
      %v829 = vpop.f32.mrf.mxu0
      %v830 = vadd.f32 %v746, %v829
      %v831 = vpop.f32.mrf.mxu0
      %832 = vmatprep.mubr.f32.mxu0 0.0
      %833 = vmatmul.mubr.f32.gmra.mxu0 %v400
      %v834 = vpop.f32.mrf.mxu0
      %v835 = vadd.f32 %v751, %v834
      %v836 = vpop.f32.mrf.mxu0
      %837 = vmatprep.mubr.f32.mxu0 0.0
      %838 = vmatmul.mubr.f32.gmra.mxu0 %v401
      %v839 = vpop.f32.mrf.mxu0
      %v840 = vadd.f32 %v756, %v839
      %v841 = vpop.f32.mrf.mxu0
      %842 = vdwg.mxu0
      %v843 = vmax.f32 %v825, 0.0
      %v844 = vmax.f32 %v830, 0.0
      %v845 = vmax.f32 %v835, 0.0
      %v846 = vmax.f32 %v840, 0.0
      %848 = vset.pattern.permute.xlu0 0
      %849 = vperm.xlu0 %848, %v432
      %v850 = vpop.permute.xlu0 %849
      %853 = vset.pattern.permute.xlu0 0
      %854 = vperm.xlu0 %853, %v433
      %v855 = vpop.permute.xlu0 %854
      %858 = vset.pattern.permute.xlu0 0
      %859 = vperm.xlu0 %858, %v434
      %v860 = vpop.permute.xlu0 %859
      %863 = vset.pattern.permute.xlu0 0
      %864 = vperm.xlu0 %863, %v435
      %v865 = vpop.permute.xlu0 %864
      %868 = vset.pattern.permute.xlu0 0
      %869 = vperm.xlu0 %868, %v436
      %v870 = vpop.permute.xlu0 %869
      %873 = vset.pattern.permute.xlu0 0
      %874 = vperm.xlu0 %873, %v437
      %v875 = vpop.permute.xlu0 %874
      %878 = vset.pattern.permute.xlu0 0
      %879 = vperm.xlu0 %878, %v438
      %v880 = vpop.permute.xlu0 %879
      %883 = vset.pattern.permute.xlu0 0
      %884 = vperm.xlu0 %883, %v439
      %v885 = vpop.permute.xlu0 %884
      %888 = vset.pattern.permute.xlu0 0
      %889 = vperm.xlu0 %888, %v440
      %v890 = vpop.permute.xlu0 %889
      %893 = vset.pattern.permute.xlu0 0
      %894 = vperm.xlu0 %893, %v441
      %v895 = vpop.permute.xlu0 %894
      %898 = vset.pattern.permute.xlu0 0
      %899 = vperm.xlu0 %898, %v442
      %v900 = vpop.permute.xlu0 %899
      %903 = vset.pattern.permute.xlu0 0
      %904 = vperm.xlu0 %903, %v443
      %v905 = vpop.permute.xlu0 %904
      %908 = vset.pattern.permute.xlu0 0
      %909 = vperm.xlu0 %908, %v444
      %v910 = vpop.permute.xlu0 %909
      %913 = vset.pattern.permute.xlu0 0
      %914 = vperm.xlu0 %913, %v445
      %v915 = vpop.permute.xlu0 %914
      %918 = vset.pattern.permute.xlu0 0
      %919 = vperm.xlu0 %918, %v446
      %v920 = vpop.permute.xlu0 %919
      %923 = vset.pattern.permute.xlu0 0
      %924 = vperm.xlu0 %923, %v447
      %v925 = vpop.permute.xlu0 %924
      %vm927 = vcmask 261120
      %v929 = vsel %vm927, %v406, 0
      %v932 = vsel %vm927, %v407, 0
      %v935 = vsel %vm927, %v408, 0
      %v938 = vsel %vm927, %v409, 0
      %v941 = vsel %vm927, %v410, 0
      %v944 = vsel %vm927, %v411, 0
      %v947 = vsel %vm927, %v412, 0
      %v950 = vsel %vm927, %v413, 0
      %v953 = vsel %vm927, %v414, 0
      %v956 = vsel %vm927, %v415, 0
      %v959 = vsel %vm927, %v416, 0
      %v962 = vsel %vm927, %v417, 0
      %v965 = vsel %vm927, %v418, 0
      %v968 = vsel %vm927, %v419, 0
      %v971 = vsel %vm927, %v420, 0
      %v974 = vsel %vm927, %v421, 0
      %976 = vmatprep.subr.mxu0 0.0
      %977 = vmatpush1.msra.mxu0 0.0
      %978 = vmatprep.subr.mxu0 0.0
      %979 = vmatpush1.msra.mxu0 0.0
      %980 = vmatprep.subr.mxu0 0.0
      %981 = vmatpush1.msra.mxu0 0.0
      %982 = vmatprep.subr.mxu0 0.0
      %983 = vmatpush1.msra.mxu0 0.0
      %984 = vmatprep.subr.mxu0 0.0
      %985 = vmatpush1.msra.mxu0 0.0
      %986 = vmatprep.subr.mxu0 0.0
      %987 = vmatpush1.msra.mxu0 0.0
      %988 = vmatprep.subr.mxu0 0.0
      %989 = vmatpush1.msra.mxu0 0.0
      %990 = vmatprep.subr.mxu0 0.0
      %991 = vmatpush1.msra.mxu0 0.0
      %992 = vmatprep.subr.mxu0 0.0
      %993 = vmatpush1.msra.mxu0 0.0
      %994 = vmatprep.subr.mxu0 0.0
      %995 = vmatpush1.msra.mxu0 0.0
      %996 = vmatprep.subr.mxu0 0.0
      %997 = vmatpush1.msra.mxu0 0.0
      %998 = vmatprep.subr.mxu0 0.0
      %999 = vmatpush1.msra.mxu0 0.0
      %1000 = vmatprep.subr.mxu0 0.0
      %1001 = vmatpush1.msra.mxu0 %v846
      %1002 = vmatprep.subr.mxu0 0.0
      %1003 = vmatpush1.msra.mxu0 %v845
      %1004 = vmatprep.subr.mxu0 0.0
      %1005 = vmatpush1.msra.mxu0 %v844
      %1006 = vmatprep.subr.mxu0 0.0
      %1007 = vmatpush1.msra.mxu0 %v843
      %1008 = vmatprep.subr.mxu0 0.0
      %1009 = vmatpush2.msra.mxu0 0.0
      %1010 = vmatprep.subr.mxu0 0.0
      %1011 = vmatpush2.msra.mxu0 0.0
      %1012 = vmatprep.subr.mxu0 0.0
      %1013 = vmatpush2.msra.mxu0 0.0
      %1014 = vmatprep.subr.mxu0 0.0
      %1015 = vmatpush2.msra.mxu0 0.0
      %1016 = vmatprep.subr.mxu0 0.0
      %1017 = vmatpush2.msra.mxu0 0.0
      %1018 = vmatprep.subr.mxu0 0.0
      %1019 = vmatpush2.msra.mxu0 0.0
      %1020 = vmatprep.subr.mxu0 0.0
      %1021 = vmatpush2.msra.mxu0 0.0
      %1022 = vmatprep.subr.mxu0 0.0
      %1023 = vmatpush2.msra.mxu0 0.0
      %1024 = vmatprep.subr.mxu0 0.0
      %1025 = vmatpush2.msra.mxu0 0.0
      %1026 = vmatprep.subr.mxu0 0.0
      %1027 = vmatpush2.msra.mxu0 0.0
      %1028 = vmatprep.subr.mxu0 0.0
      %1029 = vmatpush2.msra.mxu0 0.0
      %1030 = vmatprep.subr.mxu0 0.0
      %1031 = vmatpush2.msra.mxu0 0.0
      %1032 = vmatprep.subr.mxu0 0.0
      %1033 = vmatpush2.msra.mxu0 0.0
      %1034 = vmatprep.subr.mxu0 0.0
      %1035 = vmatpush2.msra.mxu0 0.0
      %1036 = vmatprep.subr.mxu0 0.0
      %1037 = vmatpush2.msra.mxu0 0.0
      %1038 = vmatprep.subr.mxu0 0.0
      %1039 = vmatpush2.msra.mxu0 0.0
      %1040 = vmatprep.mubr.f32.mxu0 0.0
      %1041 = vmatmul.mubr.f32.gmra.mxu0 %v929
      %v1042 = vpop.f32.mrf.mxu0
      %v1043 = vadd.f32 %v850, %v1042
      %v1044 = vpop.f32.mrf.mxu0
      %1045 = vmatprep.mubr.f32.mxu0 0.0
      %1046 = vmatmul.mubr.f32.gmra.mxu0 %v932
      %v1047 = vpop.f32.mrf.mxu0
      %v1048 = vadd.f32 %v855, %v1047
      %v1049 = vpop.f32.mrf.mxu0
      %1050 = vmatprep.mubr.f32.mxu0 0.0
      %1051 = vmatmul.mubr.f32.gmra.mxu0 %v935
      %v1052 = vpop.f32.mrf.mxu0
      %v1053 = vadd.f32 %v860, %v1052
      %v1054 = vpop.f32.mrf.mxu0
      %1055 = vmatprep.mubr.f32.mxu0 0.0
      %1056 = vmatmul.mubr.f32.gmra.mxu0 %v938
      %v1057 = vpop.f32.mrf.mxu0
      %v1058 = vadd.f32 %v865, %v1057
      %v1059 = vpop.f32.mrf.mxu0
      %1060 = vmatprep.mubr.f32.mxu0 0.0
      %1061 = vmatmul.mubr.f32.gmra.mxu0 %v941
      %v1062 = vpop.f32.mrf.mxu0
      %v1063 = vadd.f32 %v870, %v1062
      %v1064 = vpop.f32.mrf.mxu0
      %1065 = vmatprep.mubr.f32.mxu0 0.0
      %1066 = vmatmul.mubr.f32.gmra.mxu0 %v944
      %v1067 = vpop.f32.mrf.mxu0
      %v1068 = vadd.f32 %v875, %v1067
      %v1069 = vpop.f32.mrf.mxu0
      %1070 = vmatprep.mubr.f32.mxu0 0.0
      %1071 = vmatmul.mubr.f32.gmra.mxu0 %v947
      %v1072 = vpop.f32.mrf.mxu0
      %v1073 = vadd.f32 %v880, %v1072
      %v1074 = vpop.f32.mrf.mxu0
      %1075 = vmatprep.mubr.f32.mxu0 0.0
      %1076 = vmatmul.mubr.f32.gmra.mxu0 %v950
      %v1077 = vpop.f32.mrf.mxu0
      %v1078 = vadd.f32 %v885, %v1077
      %v1079 = vpop.f32.mrf.mxu0
      %1080 = vmatprep.mubr.f32.mxu0 0.0
      %1081 = vmatmul.mubr.f32.gmra.mxu0 %v953
      %v1082 = vpop.f32.mrf.mxu0
      %v1083 = vadd.f32 %v890, %v1082
      %v1084 = vpop.f32.mrf.mxu0
      %1085 = vmatprep.mubr.f32.mxu0 0.0
      %1086 = vmatmul.mubr.f32.gmra.mxu0 %v956
      %v1087 = vpop.f32.mrf.mxu0
      %v1088 = vadd.f32 %v895, %v1087
      %v1089 = vpop.f32.mrf.mxu0
      %1090 = vmatprep.mubr.f32.mxu0 0.0
      %1091 = vmatmul.mubr.f32.gmra.mxu0 %v959
      %v1092 = vpop.f32.mrf.mxu0
      %v1093 = vadd.f32 %v900, %v1092
      %v1094 = vpop.f32.mrf.mxu0
      %1095 = vmatprep.mubr.f32.mxu0 0.0
      %1096 = vmatmul.mubr.f32.gmra.mxu0 %v962
      %v1097 = vpop.f32.mrf.mxu0
      %v1098 = vadd.f32 %v905, %v1097
      %v1099 = vpop.f32.mrf.mxu0
      %1100 = vmatprep.mubr.f32.mxu0 0.0
      %1101 = vmatmul.mubr.f32.gmra.mxu0 %v965
      %v1102 = vpop.f32.mrf.mxu0
      %v1103 = vadd.f32 %v910, %v1102
      %v1104 = vpop.f32.mrf.mxu0
      %1105 = vmatprep.mubr.f32.mxu0 0.0
      %1106 = vmatmul.mubr.f32.gmra.mxu0 %v968
      %v1107 = vpop.f32.mrf.mxu0
      %v1108 = vadd.f32 %v915, %v1107
      %v1109 = vpop.f32.mrf.mxu0
      %1110 = vmatprep.mubr.f32.mxu0 0.0
      %1111 = vmatmul.mubr.f32.gmra.mxu0 %v971
      %v1112 = vpop.f32.mrf.mxu0
      %v1113 = vadd.f32 %v920, %v1112
      %v1114 = vpop.f32.mrf.mxu0
      %1115 = vmatprep.mubr.f32.mxu0 0.0
      %1116 = vmatmul.mubr.f32.gmra.mxu0 %v974
      %v1117 = vpop.f32.mrf.mxu0
      %v1118 = vadd.f32 %v925, %v1117
      %v1119 = vpop.f32.mrf.mxu0
      %1120 = vdwg.mxu0
      %v1121 = vmax.f32 %v1043, 0.0
      %v1122 = vmax.f32 %v1048, 0.0
      %v1123 = vmax.f32 %v1053, 0.0
      %v1124 = vmax.f32 %v1058, 0.0
      %v1125 = vmax.f32 %v1063, 0.0
      %v1126 = vmax.f32 %v1068, 0.0
      %v1127 = vmax.f32 %v1073, 0.0
      %v1128 = vmax.f32 %v1078, 0.0
      %v1129 = vmax.f32 %v1083, 0.0
      %v1130 = vmax.f32 %v1088, 0.0
      %v1131 = vmax.f32 %v1093, 0.0
      %v1132 = vmax.f32 %v1098, 0.0
      %v1133 = vmax.f32 %v1103, 0.0
      %v1134 = vmax.f32 %v1108, 0.0
      %v1135 = vmax.f32 %v1113, 0.0
      %v1136 = vmax.f32 %v1118, 0.0
      %1138 = vset.pattern.permute.xlu0 0
      %1139 = vperm.xlu0 %1138, %v426
      %v1140 = vpop.permute.xlu0 %1139
      %1143 = vset.pattern.permute.xlu0 0
      %1144 = vperm.xlu0 %1143, %v427
      %v1145 = vpop.permute.xlu0 %1144
      %1148 = vset.pattern.permute.xlu0 0
      %1149 = vperm.xlu0 %1148, %v428
      %v1150 = vpop.permute.xlu0 %1149
      %1153 = vset.pattern.permute.xlu0 0
      %1154 = vperm.xlu0 %1153, %v429
      %v1155 = vpop.permute.xlu0 %1154
      %1157 = vmatprep.subr.mxu0 0.0
      %1158 = vmatpush1.msra.mxu0 %v1136
      %1159 = vmatprep.subr.mxu0 0.0
      %1160 = vmatpush1.msra.mxu0 %v1135
      %1161 = vmatprep.subr.mxu0 0.0
      %1162 = vmatpush1.msra.mxu0 %v1134
      %1163 = vmatprep.subr.mxu0 0.0
      %1164 = vmatpush1.msra.mxu0 %v1133
      %1165 = vmatprep.subr.mxu0 0.0
      %1166 = vmatpush1.msra.mxu0 %v1132
      %1167 = vmatprep.subr.mxu0 0.0
      %1168 = vmatpush1.msra.mxu0 %v1131
      %1169 = vmatprep.subr.mxu0 0.0
      %1170 = vmatpush1.msra.mxu0 %v1130
      %1171 = vmatprep.subr.mxu0 0.0
      %1172 = vmatpush1.msra.mxu0 %v1129
      %1173 = vmatprep.subr.mxu0 0.0
      %1174 = vmatpush1.msra.mxu0 %v1128
      %1175 = vmatprep.subr.mxu0 0.0
      %1176 = vmatpush1.msra.mxu0 %v1127
      %1177 = vmatprep.subr.mxu0 0.0
      %1178 = vmatpush1.msra.mxu0 %v1126
      %1179 = vmatprep.subr.mxu0 0.0
      %1180 = vmatpush1.msra.mxu0 %v1125
      %1181 = vmatprep.subr.mxu0 0.0
      %1182 = vmatpush1.msra.mxu0 %v1124
      %1183 = vmatprep.subr.mxu0 0.0
      %1184 = vmatpush1.msra.mxu0 %v1123
      %1185 = vmatprep.subr.mxu0 0.0
      %1186 = vmatpush1.msra.mxu0 %v1122
      %1187 = vmatprep.subr.mxu0 0.0
      %1188 = vmatpush1.msra.mxu0 %v1121
      %1189 = vmatprep.subr.mxu0 0.0
      %1190 = vmatpush2.msra.mxu0 0.0
      %1191 = vmatprep.subr.mxu0 0.0
      %1192 = vmatpush2.msra.mxu0 0.0
      %1193 = vmatprep.subr.mxu0 0.0
      %1194 = vmatpush2.msra.mxu0 0.0
      %1195 = vmatprep.subr.mxu0 0.0
      %1196 = vmatpush2.msra.mxu0 0.0
      %1197 = vmatprep.subr.mxu0 0.0
      %1198 = vmatpush2.msra.mxu0 0.0
      %1199 = vmatprep.subr.mxu0 0.0
      %1200 = vmatpush2.msra.mxu0 0.0
      %1201 = vmatprep.subr.mxu0 0.0
      %1202 = vmatpush2.msra.mxu0 0.0
      %1203 = vmatprep.subr.mxu0 0.0
      %1204 = vmatpush2.msra.mxu0 0.0
      %1205 = vmatprep.subr.mxu0 0.0
      %1206 = vmatpush2.msra.mxu0 0.0
      %1207 = vmatprep.subr.mxu0 0.0
      %1208 = vmatpush2.msra.mxu0 0.0
      %1209 = vmatprep.subr.mxu0 0.0
      %1210 = vmatpush2.msra.mxu0 0.0
      %1211 = vmatprep.subr.mxu0 0.0
      %1212 = vmatpush2.msra.mxu0 0.0
      %1213 = vmatprep.subr.mxu0 0.0
      %1214 = vmatpush2.msra.mxu0 0.0
      %1215 = vmatprep.subr.mxu0 0.0
      %1216 = vmatpush2.msra.mxu0 0.0
      %1217 = vmatprep.subr.mxu0 0.0
      %1218 = vmatpush2.msra.mxu0 0.0
      %1219 = vmatprep.subr.mxu0 0.0
      %1220 = vmatpush2.msra.mxu0 0.0
      %1221 = vmatprep.mubr.f32.mxu0 0.0
      %1222 = vmatmul.mubr.f32.gmra.mxu0 %v422
      %v1223 = vpop.f32.mrf.mxu0
      %v1224 = vadd.f32 %v1140, %v1223
      %v1225 = vpop.f32.mrf.mxu0
      %1226 = vmatprep.mubr.f32.mxu0 0.0
      %1227 = vmatmul.mubr.f32.gmra.mxu0 %v423
      %v1228 = vpop.f32.mrf.mxu0
      %v1229 = vadd.f32 %v1145, %v1228
      %v1230 = vpop.f32.mrf.mxu0
      %1231 = vmatprep.mubr.f32.mxu0 0.0
      %1232 = vmatmul.mubr.f32.gmra.mxu0 %v424
      %v1233 = vpop.f32.mrf.mxu0
      %v1234 = vadd.f32 %v1150, %v1233
      %v1235 = vpop.f32.mrf.mxu0
      %1236 = vmatprep.mubr.f32.mxu0 0.0
      %1237 = vmatmul.mubr.f32.gmra.mxu0 %v425
      %v1238 = vpop.f32.mrf.mxu0
      %v1239 = vadd.f32 %v1155, %v1238
      %v1240 = vpop.f32.mrf.mxu0
      %1241 = vdwg.mxu0
      %vm1242 = vcmask 523264
      %1243 = vst.msk [vmem:[%s364] sm:$0xff] %vm1242, %v1224
      %1244 = vst.msk [vmem:[%s364 + $0x8] sm:$0xff] %vm1242, %v1229
      %1245 = vst.msk [vmem:[%s364 + $0x10] sm:$0xff] %vm1242, %v1234
      %1246 = vst.msk [vmem:[%s364 + $0x18] sm:$0xff] %vm1242, %v1239
      %s1247 = scalar_lea.vmem %s350, 16
      %v1248 = vld [vmem:[%s1247] sm:$0xff]
      %v1249 = vld [vmem:[%s1247 + $0x8] sm:$0xff]
      %s1250 = scalar_lea.vmem %s357, 128
      %v1251 = vld [vmem:[%s1250] sm:$0xff]
      %v1252 = vld [vmem:[%s1250 + $0x8] sm:$0xff]
      %v1253 = vld [vmem:[%s1250 + $0x10] sm:$0xff]
      %v1254 = vld [vmem:[%s1250 + $0x18] sm:$0xff]
      %v1255 = vld [vmem:[%s1250 + $0x20] sm:$0xff]
      %v1256 = vld [vmem:[%s1250 + $0x28] sm:$0xff]
      %v1257 = vld [vmem:[%s1250 + $0x30] sm:$0xff]
      %v1258 = vld [vmem:[%s1250 + $0x38] sm:$0xff]
      %v1259 = vld [vmem:[%s1250 + $0x40] sm:$0xff]
      %v1260 = vld [vmem:[%s1250 + $0x48] sm:$0xff]
      %v1261 = vld [vmem:[%s1250 + $0x50] sm:$0xff]
      %v1262 = vld [vmem:[%s1250 + $0x58] sm:$0xff]
      %v1263 = vld [vmem:[%s1250 + $0x60] sm:$0xff]
      %v1264 = vld [vmem:[%s1250 + $0x68] sm:$0xff]
      %v1265 = vld [vmem:[%s1250 + $0x70] sm:$0xff]
      %v1266 = vld [vmem:[%s1250 + $0x78] sm:$0xff]
      %1267 = vmatprep.subr.mxu0 0.0
      %1268 = vmatpush1.msra.mxu0 0.0
      %1269 = vmatprep.subr.mxu0 0.0
      %1270 = vmatpush1.msra.mxu0 0.0
      %1271 = vmatprep.subr.mxu0 0.0
      %1272 = vmatpush1.msra.mxu0 0.0
      %1273 = vmatprep.subr.mxu0 0.0
      %1274 = vmatpush1.msra.mxu0 0.0
      %1275 = vmatprep.subr.mxu0 0.0
      %1276 = vmatpush1.msra.mxu0 0.0
      %1277 = vmatprep.subr.mxu0 0.0
      %1278 = vmatpush1.msra.mxu0 0.0
      %1279 = vmatprep.subr.mxu0 0.0
      %1280 = vmatpush1.msra.mxu0 0.0
      %1281 = vmatprep.subr.mxu0 0.0
      %1282 = vmatpush1.msra.mxu0 0.0
      %1283 = vmatprep.subr.mxu0 0.0
      %1284 = vmatpush1.msra.mxu0 0.0
      %1285 = vmatprep.subr.mxu0 0.0
      %1286 = vmatpush1.msra.mxu0 0.0
      %1287 = vmatprep.subr.mxu0 0.0
      %1288 = vmatpush1.msra.mxu0 0.0
      %1289 = vmatprep.subr.mxu0 0.0
      %1290 = vmatpush1.msra.mxu0 0.0
      %1291 = vmatprep.subr.mxu0 0.0
      %1292 = vmatpush1.msra.mxu0 0.0
      %1293 = vmatprep.subr.mxu0 0.0
      %1294 = vmatpush1.msra.mxu0 0.0
      %1295 = vmatprep.subr.mxu0 0.0
      %1296 = vmatpush1.msra.mxu0 %v1249
      %1297 = vmatprep.subr.mxu0 0.0
      %1298 = vmatpush1.msra.mxu0 %v1248
      %1299 = vmatprep.subr.mxu0 0.0
      %1300 = vmatpush2.msra.mxu0 0.0
      %1301 = vmatprep.subr.mxu0 0.0
      %1302 = vmatpush2.msra.mxu0 0.0
      %1303 = vmatprep.subr.mxu0 0.0
      %1304 = vmatpush2.msra.mxu0 0.0
      %1305 = vmatprep.subr.mxu0 0.0
      %1306 = vmatpush2.msra.mxu0 0.0
      %1307 = vmatprep.subr.mxu0 0.0
      %1308 = vmatpush2.msra.mxu0 0.0
      %1309 = vmatprep.subr.mxu0 0.0
      %1310 = vmatpush2.msra.mxu0 0.0
      %1311 = vmatprep.subr.mxu0 0.0
      %1312 = vmatpush2.msra.mxu0 0.0
      %1313 = vmatprep.subr.mxu0 0.0
      %1314 = vmatpush2.msra.mxu0 0.0
      %1315 = vmatprep.subr.mxu0 0.0
      %1316 = vmatpush2.msra.mxu0 0.0
      %1317 = vmatprep.subr.mxu0 0.0
      %1318 = vmatpush2.msra.mxu0 0.0
      %1319 = vmatprep.subr.mxu0 0.0
      %1320 = vmatpush2.msra.mxu0 0.0
      %1321 = vmatprep.subr.mxu0 0.0
      %1322 = vmatpush2.msra.mxu0 0.0
      %1323 = vmatprep.subr.mxu0 0.0
      %1324 = vmatpush2.msra.mxu0 0.0
      %1325 = vmatprep.subr.mxu0 0.0
      %1326 = vmatpush2.msra.mxu0 0.0
      %1327 = vmatprep.subr.mxu0 0.0
      %1328 = vmatpush2.msra.mxu0 0.0
      %1329 = vmatprep.subr.mxu0 0.0
      %1330 = vmatpush2.msra.mxu0 0.0
      %1331 = vmatprep.mubr.f32.mxu0 0.0
      %1332 = vmatmul.mubr.f32.gmra.mxu0 %v530
      %v1333 = vpop.f32.mrf.mxu0
      %v1334 = vadd.f32 %v451, %v1333
      %v1335 = vpop.f32.mrf.mxu0
      %1336 = vmatprep.mubr.f32.mxu0 0.0
      %1337 = vmatmul.mubr.f32.gmra.mxu0 %v533
      %v1338 = vpop.f32.mrf.mxu0
      %v1339 = vadd.f32 %v456, %v1338
      %v1340 = vpop.f32.mrf.mxu0
      %1341 = vmatprep.mubr.f32.mxu0 0.0
      %1342 = vmatmul.mubr.f32.gmra.mxu0 %v536
      %v1343 = vpop.f32.mrf.mxu0
      %v1344 = vadd.f32 %v461, %v1343
      %v1345 = vpop.f32.mrf.mxu0
      %1346 = vmatprep.mubr.f32.mxu0 0.0
      %1347 = vmatmul.mubr.f32.gmra.mxu0 %v539
      %v1348 = vpop.f32.mrf.mxu0
      %v1349 = vadd.f32 %v466, %v1348
      %v1350 = vpop.f32.mrf.mxu0
      %1351 = vmatprep.mubr.f32.mxu0 0.0
      %1352 = vmatmul.mubr.f32.gmra.mxu0 %v542
      %v1353 = vpop.f32.mrf.mxu0
      %v1354 = vadd.f32 %v471, %v1353
      %v1355 = vpop.f32.mrf.mxu0
      %1356 = vmatprep.mubr.f32.mxu0 0.0
      %1357 = vmatmul.mubr.f32.gmra.mxu0 %v545
      %v1358 = vpop.f32.mrf.mxu0
      %v1359 = vadd.f32 %v476, %v1358
      %v1360 = vpop.f32.mrf.mxu0
      %1361 = vmatprep.mubr.f32.mxu0 0.0
      %1362 = vmatmul.mubr.f32.gmra.mxu0 %v548
      %v1363 = vpop.f32.mrf.mxu0
      %v1364 = vadd.f32 %v481, %v1363
      %v1365 = vpop.f32.mrf.mxu0
      %1366 = vmatprep.mubr.f32.mxu0 0.0
      %1367 = vmatmul.mubr.f32.gmra.mxu0 %v551
      %v1368 = vpop.f32.mrf.mxu0
      %v1369 = vadd.f32 %v486, %v1368
      %v1370 = vpop.f32.mrf.mxu0
      %1371 = vmatprep.mubr.f32.mxu0 0.0
      %1372 = vmatmul.mubr.f32.gmra.mxu0 %v554
      %v1373 = vpop.f32.mrf.mxu0
      %v1374 = vadd.f32 %v491, %v1373
      %v1375 = vpop.f32.mrf.mxu0
      %1376 = vmatprep.mubr.f32.mxu0 0.0
      %1377 = vmatmul.mubr.f32.gmra.mxu0 %v557
      %v1378 = vpop.f32.mrf.mxu0
      %v1379 = vadd.f32 %v496, %v1378
      %v1380 = vpop.f32.mrf.mxu0
      %1381 = vmatprep.mubr.f32.mxu0 0.0
      %1382 = vmatmul.mubr.f32.gmra.mxu0 %v560
      %v1383 = vpop.f32.mrf.mxu0
      %v1384 = vadd.f32 %v501, %v1383
      %v1385 = vpop.f32.mrf.mxu0
      %1386 = vmatprep.mubr.f32.mxu0 0.0
      %1387 = vmatmul.mubr.f32.gmra.mxu0 %v563
      %v1388 = vpop.f32.mrf.mxu0
      %v1389 = vadd.f32 %v506, %v1388
      %v1390 = vpop.f32.mrf.mxu0
      %1391 = vmatprep.mubr.f32.mxu0 0.0
      %1392 = vmatmul.mubr.f32.gmra.mxu0 %v566
      %v1393 = vpop.f32.mrf.mxu0
      %v1394 = vadd.f32 %v511, %v1393
      %v1395 = vpop.f32.mrf.mxu0
      %1396 = vmatprep.mubr.f32.mxu0 0.0
      %1397 = vmatmul.mubr.f32.gmra.mxu0 %v569
      %v1398 = vpop.f32.mrf.mxu0
      %v1399 = vadd.f32 %v516, %v1398
      %v1400 = vpop.f32.mrf.mxu0
      %1401 = vmatprep.mubr.f32.mxu0 0.0
      %1402 = vmatmul.mubr.f32.gmra.mxu0 %v572
      %v1403 = vpop.f32.mrf.mxu0
      %v1404 = vadd.f32 %v521, %v1403
      %v1405 = vpop.f32.mrf.mxu0
      %1406 = vmatprep.mubr.f32.mxu0 0.0
      %1407 = vmatmul.mubr.f32.gmra.mxu0 %v575
      %v1408 = vpop.f32.mrf.mxu0
      %v1409 = vadd.f32 %v526, %v1408
      %v1410 = vpop.f32.mrf.mxu0
      %1411 = vdwg.mxu0
      %v1412 = vmax.f32 %v1334, 0.0
      %v1413 = vmax.f32 %v1339, 0.0
      %v1414 = vmax.f32 %v1344, 0.0
      %v1415 = vmax.f32 %v1349, 0.0
      %v1416 = vmax.f32 %v1354, 0.0
      %v1417 = vmax.f32 %v1359, 0.0
      %v1418 = vmax.f32 %v1364, 0.0
      %v1419 = vmax.f32 %v1369, 0.0
      %v1420 = vmax.f32 %v1374, 0.0
      %v1421 = vmax.f32 %v1379, 0.0
      %v1422 = vmax.f32 %v1384, 0.0
      %v1423 = vmax.f32 %v1389, 0.0
      %v1424 = vmax.f32 %v1394, 0.0
      %v1425 = vmax.f32 %v1399, 0.0
      %v1426 = vmax.f32 %v1404, 0.0
      %v1427 = vmax.f32 %v1409, 0.0
      %1428 = vmatprep.subr.mxu0 0.0
      %1429 = vmatpush1.msra.mxu0 %v1427
      %1430 = vmatprep.subr.mxu0 0.0
      %1431 = vmatpush1.msra.mxu0 %v1426
      %1432 = vmatprep.subr.mxu0 0.0
      %1433 = vmatpush1.msra.mxu0 %v1425
      %1434 = vmatprep.subr.mxu0 0.0
      %1435 = vmatpush1.msra.mxu0 %v1424
      %1436 = vmatprep.subr.mxu0 0.0
      %1437 = vmatpush1.msra.mxu0 %v1423
      %1438 = vmatprep.subr.mxu0 0.0
      %1439 = vmatpush1.msra.mxu0 %v1422
      %1440 = vmatprep.subr.mxu0 0.0
      %1441 = vmatpush1.msra.mxu0 %v1421
      %1442 = vmatprep.subr.mxu0 0.0
      %1443 = vmatpush1.msra.mxu0 %v1420
      %1444 = vmatprep.subr.mxu0 0.0
      %1445 = vmatpush1.msra.mxu0 %v1419
      %1446 = vmatprep.subr.mxu0 0.0
      %1447 = vmatpush1.msra.mxu0 %v1418
      %1448 = vmatprep.subr.mxu0 0.0
      %1449 = vmatpush1.msra.mxu0 %v1417
      %1450 = vmatprep.subr.mxu0 0.0
      %1451 = vmatpush1.msra.mxu0 %v1416
      %1452 = vmatprep.subr.mxu0 0.0
      %1453 = vmatpush1.msra.mxu0 %v1415
      %1454 = vmatprep.subr.mxu0 0.0
      %1455 = vmatpush1.msra.mxu0 %v1414
      %1456 = vmatprep.subr.mxu0 0.0
      %1457 = vmatpush1.msra.mxu0 %v1413
      %1458 = vmatprep.subr.mxu0 0.0
      %1459 = vmatpush1.msra.mxu0 %v1412
      %1460 = vmatprep.subr.mxu0 0.0
      %1461 = vmatpush2.msra.mxu0 0.0
      %1462 = vmatprep.subr.mxu0 0.0
      %1463 = vmatpush2.msra.mxu0 0.0
      %1464 = vmatprep.subr.mxu0 0.0
      %1465 = vmatpush2.msra.mxu0 0.0
      %1466 = vmatprep.subr.mxu0 0.0
      %1467 = vmatpush2.msra.mxu0 0.0
      %1468 = vmatprep.subr.mxu0 0.0
      %1469 = vmatpush2.msra.mxu0 0.0
      %1470 = vmatprep.subr.mxu0 0.0
      %1471 = vmatpush2.msra.mxu0 0.0
      %1472 = vmatprep.subr.mxu0 0.0
      %1473 = vmatpush2.msra.mxu0 0.0
      %1474 = vmatprep.subr.mxu0 0.0
      %1475 = vmatpush2.msra.mxu0 0.0
      %1476 = vmatprep.subr.mxu0 0.0
      %1477 = vmatpush2.msra.mxu0 0.0
      %1478 = vmatprep.subr.mxu0 0.0
      %1479 = vmatpush2.msra.mxu0 0.0
      %1480 = vmatprep.subr.mxu0 0.0
      %1481 = vmatpush2.msra.mxu0 0.0
      %1482 = vmatprep.subr.mxu0 0.0
      %1483 = vmatpush2.msra.mxu0 0.0
      %1484 = vmatprep.subr.mxu0 0.0
      %1485 = vmatpush2.msra.mxu0 0.0
      %1486 = vmatprep.subr.mxu0 0.0
      %1487 = vmatpush2.msra.mxu0 0.0
      %1488 = vmatprep.subr.mxu0 0.0
      %1489 = vmatpush2.msra.mxu0 0.0
      %1490 = vmatprep.subr.mxu0 0.0
      %1491 = vmatpush2.msra.mxu0 0.0
      %1492 = vmatprep.mubr.f32.mxu0 0.0
      %1493 = vmatmul.mubr.f32.gmra.mxu0 %v398
      %v1494 = vpop.f32.mrf.mxu0
      %v1495 = vadd.f32 %v741, %v1494
      %v1496 = vpop.f32.mrf.mxu0
      %1497 = vmatprep.mubr.f32.mxu0 0.0
      %1498 = vmatmul.mubr.f32.gmra.mxu0 %v399
      %v1499 = vpop.f32.mrf.mxu0
      %v1500 = vadd.f32 %v746, %v1499
      %v1501 = vpop.f32.mrf.mxu0
      %1502 = vmatprep.mubr.f32.mxu0 0.0
      %1503 = vmatmul.mubr.f32.gmra.mxu0 %v400
      %v1504 = vpop.f32.mrf.mxu0
      %v1505 = vadd.f32 %v751, %v1504
      %v1506 = vpop.f32.mrf.mxu0
      %1507 = vmatprep.mubr.f32.mxu0 0.0
      %1508 = vmatmul.mubr.f32.gmra.mxu0 %v401
      %v1509 = vpop.f32.mrf.mxu0
      %v1510 = vadd.f32 %v756, %v1509
      %v1511 = vpop.f32.mrf.mxu0
      %1512 = vdwg.mxu0
      %v1513 = vmax.f32 %v1495, 0.0
      %v1514 = vmax.f32 %v1500, 0.0
      %v1515 = vmax.f32 %v1505, 0.0
      %v1516 = vmax.f32 %v1510, 0.0
      %1518 = vset.pattern.permute.xlu0 0
      %1519 = vperm.xlu0 %1518, %v1251
      %v1520 = vpop.permute.xlu0 %1519
      %1523 = vset.pattern.permute.xlu0 0
      %1524 = vperm.xlu0 %1523, %v1252
      %v1525 = vpop.permute.xlu0 %1524
      %1528 = vset.pattern.permute.xlu0 0
      %1529 = vperm.xlu0 %1528, %v1253
      %v1530 = vpop.permute.xlu0 %1529
      %1533 = vset.pattern.permute.xlu0 0
      %1534 = vperm.xlu0 %1533, %v1254
      %v1535 = vpop.permute.xlu0 %1534
      %1538 = vset.pattern.permute.xlu0 0
      %1539 = vperm.xlu0 %1538, %v1255
      %v1540 = vpop.permute.xlu0 %1539
      %1543 = vset.pattern.permute.xlu0 0
      %1544 = vperm.xlu0 %1543, %v1256
      %v1545 = vpop.permute.xlu0 %1544
      %1548 = vset.pattern.permute.xlu0 0
      %1549 = vperm.xlu0 %1548, %v1257
      %v1550 = vpop.permute.xlu0 %1549
      %1553 = vset.pattern.permute.xlu0 0
      %1554 = vperm.xlu0 %1553, %v1258
      %v1555 = vpop.permute.xlu0 %1554
      %1558 = vset.pattern.permute.xlu0 0
      %1559 = vperm.xlu0 %1558, %v1259
      %v1560 = vpop.permute.xlu0 %1559
      %1563 = vset.pattern.permute.xlu0 0
      %1564 = vperm.xlu0 %1563, %v1260
      %v1565 = vpop.permute.xlu0 %1564
      %1568 = vset.pattern.permute.xlu0 0
      %1569 = vperm.xlu0 %1568, %v1261
      %v1570 = vpop.permute.xlu0 %1569
      %1573 = vset.pattern.permute.xlu0 0
      %1574 = vperm.xlu0 %1573, %v1262
      %v1575 = vpop.permute.xlu0 %1574
      %1578 = vset.pattern.permute.xlu0 0
      %1579 = vperm.xlu0 %1578, %v1263
      %v1580 = vpop.permute.xlu0 %1579
      %1583 = vset.pattern.permute.xlu0 0
      %1584 = vperm.xlu0 %1583, %v1264
      %v1585 = vpop.permute.xlu0 %1584
      %1588 = vset.pattern.permute.xlu0 0
      %1589 = vperm.xlu0 %1588, %v1265
      %v1590 = vpop.permute.xlu0 %1589
      %1593 = vset.pattern.permute.xlu0 0
      %1594 = vperm.xlu0 %1593, %v1266
      %v1595 = vpop.permute.xlu0 %1594
      %1597 = vmatprep.subr.mxu0 0.0
      %1598 = vmatpush1.msra.mxu0 0.0
      %1599 = vmatprep.subr.mxu0 0.0
      %1600 = vmatpush1.msra.mxu0 0.0
      %1601 = vmatprep.subr.mxu0 0.0
      %1602 = vmatpush1.msra.mxu0 0.0
      %1603 = vmatprep.subr.mxu0 0.0
      %1604 = vmatpush1.msra.mxu0 0.0
      %1605 = vmatprep.subr.mxu0 0.0
      %1606 = vmatpush1.msra.mxu0 0.0
      %1607 = vmatprep.subr.mxu0 0.0
      %1608 = vmatpush1.msra.mxu0 0.0
      %1609 = vmatprep.subr.mxu0 0.0
      %1610 = vmatpush1.msra.mxu0 0.0
      %1611 = vmatprep.subr.mxu0 0.0
      %1612 = vmatpush1.msra.mxu0 0.0
      %1613 = vmatprep.subr.mxu0 0.0
      %1614 = vmatpush1.msra.mxu0 0.0
      %1615 = vmatprep.subr.mxu0 0.0
      %1616 = vmatpush1.msra.mxu0 0.0
      %1617 = vmatprep.subr.mxu0 0.0
      %1618 = vmatpush1.msra.mxu0 0.0
      %1619 = vmatprep.subr.mxu0 0.0
      %1620 = vmatpush1.msra.mxu0 0.0
      %1621 = vmatprep.subr.mxu0 0.0
      %1622 = vmatpush1.msra.mxu0 %v1516
      %1623 = vmatprep.subr.mxu0 0.0
      %1624 = vmatpush1.msra.mxu0 %v1515
      %1625 = vmatprep.subr.mxu0 0.0
      %1626 = vmatpush1.msra.mxu0 %v1514
      %1627 = vmatprep.subr.mxu0 0.0
      %1628 = vmatpush1.msra.mxu0 %v1513
      %1629 = vmatprep.subr.mxu0 0.0
      %1630 = vmatpush2.msra.mxu0 0.0
      %1631 = vmatprep.subr.mxu0 0.0
      %1632 = vmatpush2.msra.mxu0 0.0
      %1633 = vmatprep.subr.mxu0 0.0
      %1634 = vmatpush2.msra.mxu0 0.0
      %1635 = vmatprep.subr.mxu0 0.0
      %1636 = vmatpush2.msra.mxu0 0.0
      %1637 = vmatprep.subr.mxu0 0.0
      %1638 = vmatpush2.msra.mxu0 0.0
      %1639 = vmatprep.subr.mxu0 0.0
      %1640 = vmatpush2.msra.mxu0 0.0
      %1641 = vmatprep.subr.mxu0 0.0
      %1642 = vmatpush2.msra.mxu0 0.0
      %1643 = vmatprep.subr.mxu0 0.0
      %1644 = vmatpush2.msra.mxu0 0.0
      %1645 = vmatprep.subr.mxu0 0.0
      %1646 = vmatpush2.msra.mxu0 0.0
      %1647 = vmatprep.subr.mxu0 0.0
      %1648 = vmatpush2.msra.mxu0 0.0
      %1649 = vmatprep.subr.mxu0 0.0
      %1650 = vmatpush2.msra.mxu0 0.0
      %1651 = vmatprep.subr.mxu0 0.0
      %1652 = vmatpush2.msra.mxu0 0.0
      %1653 = vmatprep.subr.mxu0 0.0
      %1654 = vmatpush2.msra.mxu0 0.0
      %1655 = vmatprep.subr.mxu0 0.0
      %1656 = vmatpush2.msra.mxu0 0.0
      %1657 = vmatprep.subr.mxu0 0.0
      %1658 = vmatpush2.msra.mxu0 0.0
      %1659 = vmatprep.subr.mxu0 0.0
      %1660 = vmatpush2.msra.mxu0 0.0
      %1661 = vmatprep.mubr.f32.mxu0 0.0
      %1662 = vmatmul.mubr.f32.gmra.mxu0 %v929
      %v1663 = vpop.f32.mrf.mxu0
      %v1664 = vadd.f32 %v1520, %v1663
      %v1665 = vpop.f32.mrf.mxu0
      %1666 = vmatprep.mubr.f32.mxu0 0.0
      %1667 = vmatmul.mubr.f32.gmra.mxu0 %v932
      %v1668 = vpop.f32.mrf.mxu0
      %v1669 = vadd.f32 %v1525, %v1668
      %v1670 = vpop.f32.mrf.mxu0
      %1671 = vmatprep.mubr.f32.mxu0 0.0
      %1672 = vmatmul.mubr.f32.gmra.mxu0 %v935
      %v1673 = vpop.f32.mrf.mxu0
      %v1674 = vadd.f32 %v1530, %v1673
      %v1675 = vpop.f32.mrf.mxu0
      %1676 = vmatprep.mubr.f32.mxu0 0.0
      %1677 = vmatmul.mubr.f32.gmra.mxu0 %v938
      %v1678 = vpop.f32.mrf.mxu0
      %v1679 = vadd.f32 %v1535, %v1678
      %v1680 = vpop.f32.mrf.mxu0
      %1681 = vmatprep.mubr.f32.mxu0 0.0
      %1682 = vmatmul.mubr.f32.gmra.mxu0 %v941
      %v1683 = vpop.f32.mrf.mxu0
      %v1684 = vadd.f32 %v1540, %v1683
      %v1685 = vpop.f32.mrf.mxu0
      %1686 = vmatprep.mubr.f32.mxu0 0.0
      %1687 = vmatmul.mubr.f32.gmra.mxu0 %v944
      %v1688 = vpop.f32.mrf.mxu0
      %v1689 = vadd.f32 %v1545, %v1688
      %v1690 = vpop.f32.mrf.mxu0
      %1691 = vmatprep.mubr.f32.mxu0 0.0
      %1692 = vmatmul.mubr.f32.gmra.mxu0 %v947
      %v1693 = vpop.f32.mrf.mxu0
      %v1694 = vadd.f32 %v1550, %v1693
      %v1695 = vpop.f32.mrf.mxu0
      %1696 = vmatprep.mubr.f32.mxu0 0.0
      %1697 = vmatmul.mubr.f32.gmra.mxu0 %v950
      %v1698 = vpop.f32.mrf.mxu0
      %v1699 = vadd.f32 %v1555, %v1698
      %v1700 = vpop.f32.mrf.mxu0
      %1701 = vmatprep.mubr.f32.mxu0 0.0
      %1702 = vmatmul.mubr.f32.gmra.mxu0 %v953
      %v1703 = vpop.f32.mrf.mxu0
      %v1704 = vadd.f32 %v1560, %v1703
      %v1705 = vpop.f32.mrf.mxu0
      %1706 = vmatprep.mubr.f32.mxu0 0.0
      %1707 = vmatmul.mubr.f32.gmra.mxu0 %v956
      %v1708 = vpop.f32.mrf.mxu0
      %v1709 = vadd.f32 %v1565, %v1708
      %v1710 = vpop.f32.mrf.mxu0
      %1711 = vmatprep.mubr.f32.mxu0 0.0
      %1712 = vmatmul.mubr.f32.gmra.mxu0 %v959
      %v1713 = vpop.f32.mrf.mxu0
      %v1714 = vadd.f32 %v1570, %v1713
      %v1715 = vpop.f32.mrf.mxu0
      %1716 = vmatprep.mubr.f32.mxu0 0.0
      %1717 = vmatmul.mubr.f32.gmra.mxu0 %v962
      %v1718 = vpop.f32.mrf.mxu0
      %v1719 = vadd.f32 %v1575, %v1718
      %v1720 = vpop.f32.mrf.mxu0
      %1721 = vmatprep.mubr.f32.mxu0 0.0
      %1722 = vmatmul.mubr.f32.gmra.mxu0 %v965
      %v1723 = vpop.f32.mrf.mxu0
      %v1724 = vadd.f32 %v1580, %v1723
      %v1725 = vpop.f32.mrf.mxu0
      %1726 = vmatprep.mubr.f32.mxu0 0.0
      %1727 = vmatmul.mubr.f32.gmra.mxu0 %v968
      %v1728 = vpop.f32.mrf.mxu0
      %v1729 = vadd.f32 %v1585, %v1728
      %v1730 = vpop.f32.mrf.mxu0
      %1731 = vmatprep.mubr.f32.mxu0 0.0
      %1732 = vmatmul.mubr.f32.gmra.mxu0 %v971
      %v1733 = vpop.f32.mrf.mxu0
      %v1734 = vadd.f32 %v1590, %v1733
      %v1735 = vpop.f32.mrf.mxu0
      %1736 = vmatprep.mubr.f32.mxu0 0.0
      %1737 = vmatmul.mubr.f32.gmra.mxu0 %v974
      %v1738 = vpop.f32.mrf.mxu0
      %v1739 = vadd.f32 %v1595, %v1738
      %v1740 = vpop.f32.mrf.mxu0
      %1741 = vdwg.mxu0
      %v1742 = vmax.f32 %v1664, 0.0
      %v1743 = vmax.f32 %v1669, 0.0
      %v1744 = vmax.f32 %v1674, 0.0
      %v1745 = vmax.f32 %v1679, 0.0
      %v1746 = vmax.f32 %v1684, 0.0
      %v1747 = vmax.f32 %v1689, 0.0
      %v1748 = vmax.f32 %v1694, 0.0
      %v1749 = vmax.f32 %v1699, 0.0
      %v1750 = vmax.f32 %v1704, 0.0
      %v1751 = vmax.f32 %v1709, 0.0
      %v1752 = vmax.f32 %v1714, 0.0
      %v1753 = vmax.f32 %v1719, 0.0
      %v1754 = vmax.f32 %v1724, 0.0
      %v1755 = vmax.f32 %v1729, 0.0
      %v1756 = vmax.f32 %v1734, 0.0
      %v1757 = vmax.f32 %v1739, 0.0
      %1758 = vmatprep.subr.mxu0 0.0
      %1759 = vmatpush1.msra.mxu0 %v1757
      %1760 = vmatprep.subr.mxu0 0.0
      %1761 = vmatpush1.msra.mxu0 %v1756
      %1762 = vmatprep.subr.mxu0 0.0
      %1763 = vmatpush1.msra.mxu0 %v1755
      %1764 = vmatprep.subr.mxu0 0.0
      %1765 = vmatpush1.msra.mxu0 %v1754
      %1766 = vmatprep.subr.mxu0 0.0
      %1767 = vmatpush1.msra.mxu0 %v1753
      %1768 = vmatprep.subr.mxu0 0.0
      %1769 = vmatpush1.msra.mxu0 %v1752
      %1770 = vmatprep.subr.mxu0 0.0
      %1771 = vmatpush1.msra.mxu0 %v1751
      %1772 = vmatprep.subr.mxu0 0.0
      %1773 = vmatpush1.msra.mxu0 %v1750
      %1774 = vmatprep.subr.mxu0 0.0
      %1775 = vmatpush1.msra.mxu0 %v1749
      %1776 = vmatprep.subr.mxu0 0.0
      %1777 = vmatpush1.msra.mxu0 %v1748
      %1778 = vmatprep.subr.mxu0 0.0
      %1779 = vmatpush1.msra.mxu0 %v1747
      %1780 = vmatprep.subr.mxu0 0.0
      %1781 = vmatpush1.msra.mxu0 %v1746
      %1782 = vmatprep.subr.mxu0 0.0
      %1783 = vmatpush1.msra.mxu0 %v1745
      %1784 = vmatprep.subr.mxu0 0.0
      %1785 = vmatpush1.msra.mxu0 %v1744
      %1786 = vmatprep.subr.mxu0 0.0
      %1787 = vmatpush1.msra.mxu0 %v1743
      %1788 = vmatprep.subr.mxu0 0.0
      %1789 = vmatpush1.msra.mxu0 %v1742
      %1790 = vmatprep.subr.mxu0 0.0
      %1791 = vmatpush2.msra.mxu0 0.0
      %1792 = vmatprep.subr.mxu0 0.0
      %1793 = vmatpush2.msra.mxu0 0.0
      %1794 = vmatprep.subr.mxu0 0.0
      %1795 = vmatpush2.msra.mxu0 0.0
      %1796 = vmatprep.subr.mxu0 0.0
      %1797 = vmatpush2.msra.mxu0 0.0
      %1798 = vmatprep.subr.mxu0 0.0
      %1799 = vmatpush2.msra.mxu0 0.0
      %1800 = vmatprep.subr.mxu0 0.0
      %1801 = vmatpush2.msra.mxu0 0.0
      %1802 = vmatprep.subr.mxu0 0.0
      %1803 = vmatpush2.msra.mxu0 0.0
      %1804 = vmatprep.subr.mxu0 0.0
      %1805 = vmatpush2.msra.mxu0 0.0
      %1806 = vmatprep.subr.mxu0 0.0
      %1807 = vmatpush2.msra.mxu0 0.0
      %1808 = vmatprep.subr.mxu0 0.0
      %1809 = vmatpush2.msra.mxu0 0.0
      %1810 = vmatprep.subr.mxu0 0.0
      %1811 = vmatpush2.msra.mxu0 0.0
      %1812 = vmatprep.subr.mxu0 0.0
      %1813 = vmatpush2.msra.mxu0 0.0
      %1814 = vmatprep.subr.mxu0 0.0
      %1815 = vmatpush2.msra.mxu0 0.0
      %1816 = vmatprep.subr.mxu0 0.0
      %1817 = vmatpush2.msra.mxu0 0.0
      %1818 = vmatprep.subr.mxu0 0.0
      %1819 = vmatpush2.msra.mxu0 0.0
      %1820 = vmatprep.subr.mxu0 0.0
      %1821 = vmatpush2.msra.mxu0 0.0
      %1822 = vmatprep.mubr.f32.mxu0 0.0
      %1823 = vmatmul.mubr.f32.gmra.mxu0 %v422
      %v1824 = vpop.f32.mrf.mxu0
      %v1825 = vadd.f32 %v1140, %v1824
      %v1826 = vpop.f32.mrf.mxu0
      %1827 = vmatprep.mubr.f32.mxu0 0.0
      %1828 = vmatmul.mubr.f32.gmra.mxu0 %v423
      %v1829 = vpop.f32.mrf.mxu0
      %v1830 = vadd.f32 %v1145, %v1829
      %v1831 = vpop.f32.mrf.mxu0
      %1832 = vmatprep.mubr.f32.mxu0 0.0
      %1833 = vmatmul.mubr.f32.gmra.mxu0 %v424
      %v1834 = vpop.f32.mrf.mxu0
      %v1835 = vadd.f32 %v1150, %v1834
      %v1836 = vpop.f32.mrf.mxu0
      %1837 = vmatprep.mubr.f32.mxu0 0.0
      %1838 = vmatmul.mubr.f32.gmra.mxu0 %v425
      %v1839 = vpop.f32.mrf.mxu0
      %v1840 = vadd.f32 %v1155, %v1839
      %v1841 = vpop.f32.mrf.mxu0
      %1842 = vdwg.mxu0
      %s1843 = scalar_lea.vmem %s364, 32
      %1844 = vst.msk [vmem:[%s1843] sm:$0xff] %vm1242, %v1825
      %1845 = vst.msk [vmem:[%s1843 + $0x8] sm:$0xff] %vm1242, %v1830
      %1846 = vst.msk [vmem:[%s1843 + $0x10] sm:$0xff] %vm1242, %v1835
      %1847 = vst.msk [vmem:[%s1843 + $0x18] sm:$0xff] %vm1242, %v1840
      %s1848 = smul.u32 2, %s20
      %p1849 = scmp.lt.s32.totalorder %s1848, 3
      %s1850 = scalar_select %p1849, %s1848, 3
      %s1851 = smul.addr %s1850, 4
      %s1852 = smul.addr %s1851, 8
      %s1853 = scalar_lea.vmem %s9, %s1852
      // Predicated region
      $region57: #{forward.1} parent=55 // pred_check
        %p1854 = pneg %p237
      $region58: #{forward.1} parent=55 // pred_check_branch
        %1856 = sbr.rel (%p1854) target = $region60
      $region59: #{forward.1} parent=55 // pred_region
        %s1857 = smul.u32 2, %s20
      $region60: #{forward.1} parent=55 // pred_fallthru
        _
    $region56: #{forward.1} parent=5 // pred_fallthru
      _
    %p1858 = scmp.le.s32.totalorder 2, %s15
    // Predicated region
    $region61: #{forward.1} parent=5 // pred_check
      %p1859 = pneg %p1858
    $region62: #{forward.1} parent=5 // pred_check_branch
      %1861 = sbr.rel (%p1859) target = $region64
    $region63: #{forward.1} parent=5 // pred_region
      %s1862 = ssub.s32 %s15, 2
      // Predicated region
      $region65: #{forward.1} parent=63 // pred_check
        %p1863 = pneg %p243
      $region66: #{forward.1} parent=63 // pred_check_branch
        %1865 = sbr.rel (%p1863) target = $region68
      $region67: #{forward.1} parent=63 // pred_region
        %s1866 = smul.u32 2, %s21
        %p1867 = scmp.lt.s32.totalorder %s1866, 3
        %s1868 = scalar_select %p1867, %s1866, 3
        %s1869 = smul.addr %s1868, 4
        %s1870 = smul.addr %s1869, 8
        %s1871 = scalar_lea.vmem %s9, %s1870
      $region68: #{forward.1} parent=63 // pred_fallthru
        _
    $region64: #{forward.1} parent=5 // pred_fallthru
      _
  $region6: #{forward.1} parent=0 // loop_footer
    %s19 = sadd.s32 1, %s15
  $region7: #{forward.1} parent=0 // loop_footer_branch
    %14 = sbr.rel target = $region3
  $region8: #{forward.1} parent=0 // loop_exit
    _

</llo_original>
